<compile_context>
chip_gen: v7x
topology: tpu7x:2x2x1
jax: 0.10.0
libtpu: 0.0.40
codegen_flags: <defaults>
</compile_context>

<pallas_src>
import functools

import jax
import jax.numpy as jnp
from jax.experimental import pallas as pl
from jax.experimental.pallas import tpu as pltpu

K = 10
ALPHA = 0.1
LANE = 128   # all minor dims padded to a multiple of this


def _round_up(x, m):
    return (x + m - 1) // m * m


def _pad2(x, rows, cols):
    return jnp.pad(x, ((0, rows - x.shape[0]), (0, cols - x.shape[1])))


def _nbytes(shape, itemsize, bufs=1):
    n = 1
    for s in shape:
        n *= s
    return n * itemsize * bufs


def _tpu_config():
    """Per-generation (VMEM budget in bytes, node-row tile)."""
    kind = ""
    try:
        kind = jax.devices()[0].device_kind.lower()
    except Exception:
        pass
    if "v7" in kind or "tpu7" in kind:
        # v7x: 64 MiB VMEM per core -> leave headroom; 256-wide MXU.
        return 48 * 1024 * 1024, 256
    if "v6" in kind:
        # v6e: 128 MiB VMEM; 256-wide MXU.
        return 100 * 1024 * 1024, 256
    if "v5e" in kind or "v5 lite" in kind or "v5lite" in kind:
        # v5e: 128 MiB VMEM; 128-wide MXU, most HBM-bound generation.
        return 100 * 1024 * 1024, 128
    # Unknown (v3/v4/v5p/...): conservative defaults.
    return 64 * 1024 * 1024, 128


# ---------------------------------------------------------------------------
# Fused kernel.
#   grid = (k_steps + 1, num_row_tiles)   (k outer/sequential, i inner)
#   k == 0 : Z tile = relu(X W1 + b1) W2 + b2 -> p_ref[0], az_ref (alpha*Z)
#   k >= 1 : P_k tile = A_prop[rows] @ P_{k-1} + alpha*Z[rows]
#            (A_prop = (1 - alpha) * A_hat folded in the wrapper, bf16)
#   k == k_steps : write the f32 result tile into the VMEM-resident output.
# ---------------------------------------------------------------------------
def appnp_kernel(x_ref, w1_ref, b1_ref, w2_ref, b2_ref, a_ref, o_ref,
                 p_ref, az_ref, *, alpha, tile_n, k_steps, a_resident):
    k = pl.program_id(0)
    i = pl.program_id(1)
    row0 = pl.multiple_of(i * tile_n, tile_n)
    rows = pl.ds(row0, tile_n)

    # ---- k == 0: MLP, seeds P_0 and alpha*Z -------------------------------
    @pl.when(k == 0)
    def _():
        h = jnp.dot(x_ref[...], w1_ref[...], preferred_element_type=jnp.float32)
        h = jnp.maximum(h + b1_ref[...], 0.0)
        z = (jnp.dot(h, w2_ref[...], preferred_element_type=jnp.float32)
             + b2_ref[...])
        p_ref[0, rows, :] = z.astype(p_ref.dtype)      # bf16 P_0
        az_ref[rows, :] = alpha * z                     # f32 alpha*Z
        if k_steps == 0:                                # degenerate K == 0
            o_ref[rows, :] = z

    # ---- k >= 1: one propagation step --------------------------------------
    @pl.when(k > 0)
    def _():
        p_prev = p_ref[(k + 1) % 2]                     # bf16 (N_pad, C_pad) = P_{k-1}
        if a_resident:
            a_rows = a_ref[rows, :]                     # slice of VMEM-resident A
        else:
            a_rows = a_ref[...]                         # streamed (tile_n, N_pad) panel
        p_new = (jnp.dot(a_rows, p_prev, preferred_element_type=jnp.float32)
                 + az_ref[rows, :])

        wslot = k % 2

        @pl.when(wslot == 0)
        def _():
            p_ref[0, rows, :] = p_new.astype(p_ref.dtype)

        @pl.when(wslot == 1)
        def _():
            p_ref[1, rows, :] = p_new.astype(p_ref.dtype)

        # Resident output block (constant index map) -> single HBM writeback.
        @pl.when(k == k_steps)
        def _():
            o_ref[rows, :] = p_new


# ---------------------------------------------------------------------------
# Wrapper
# ---------------------------------------------------------------------------
def appnp_forward(x, w1, b1, w2, b2, a_hat, *, k_steps=K, alpha=ALPHA):
    n, f = x.shape
    hdim = w1.shape[1]
    c = w2.shape[1]

    vmem_cap, tile_n = _tpu_config()

    n_pad = _round_up(n, tile_n)
    f_pad = _round_up(f, LANE)
    h_pad = _round_up(hdim, LANE)
    c_pad = _round_up(c, LANE)
    num_tiles = n_pad // tile_n

    xp = _pad2(x.astype(jnp.float32), n_pad, f_pad)
    w1p = _pad2(w1, f_pad, h_pad)
    b1p = _pad2(b1, 1, h_pad)
    w2p = _pad2(w2, h_pad, c_pad)
    b2p = _pad2(b2, 1, c_pad)

    # Hoist the loop-invariant (1 - alpha) into A once; bf16 halves the HBM /
    # VMEM bytes of the K * N^2 hot stream and is MXU-native.
    a_prop = ((1.0 - alpha) * _pad2(a_hat, n_pad, n_pad)).astype(jnp.bfloat16)

    # ---- VMEM footprint: decide A-resident vs. streamed, set vmem limit ----
    # (factor 2 = default double-buffering for pipelined inputs / output,
    #  factor 3 = deeper pipeline on the streamed A panel.)
    common = (_nbytes((tile_n, f_pad), 4, 2)        # X row tile
              + _nbytes((f_pad, h_pad), 4, 2)       # W1
              + _nbytes((8, h_pad), 4, 2)           # b1 (sublane padded)
              + _nbytes((h_pad, c_pad), 4, 2)       # W2
              + _nbytes((8, c_pad), 4, 2)           # b2
              + _nbytes((n_pad, c_pad), 4, 2)       # resident f32 output
              + _nbytes((2, n_pad, c_pad), 2)       # bf16 P ping-pong scratch
              + _nbytes((n_pad, c_pad), 4))         # f32 alpha*Z scratch
    resident_bytes = common + _nbytes((n_pad, n_pad), 2, 2)
    streamed_bytes = common + _nbytes((tile_n, n_pad), 2, 3)

    a_resident = resident_bytes <= int(0.8 * vmem_cap)
    footprint = resident_bytes if a_resident else streamed_bytes
    vmem_limit = int(min(vmem_cap, max(footprint * 3 // 2, 64 * 1024 * 1024)))

    const0 = lambda k, i: (0, 0)
    # Stream X row tiles only at k == 0; afterwards pin block (0, 0) so the
    # pipeline skips re-fetching X every propagation step.
    x_map = lambda k, i: (i * (1 - jnp.minimum(k, 1)), 0)

    if a_resident:
        # Full A held in VMEM for all K steps (fetched once).
        a_spec = pl.BlockSpec((n_pad, n_pad), const0)
    else:
        # Stream (tile_n, N) row panels; pinned to block 0 during the k == 0
        # MLP pass, deeper pipeline to keep the HBM stream saturated.
        a_spec = pl.BlockSpec((tile_n, n_pad),
                              lambda k, i: (i * jnp.minimum(k, 1), 0),
                              pipeline_mode=pl.Buffered(3))

    kern = functools.partial(appnp_kernel, alpha=alpha, tile_n=tile_n,
                             k_steps=k_steps, a_resident=a_resident)

    out_pad = pl.pallas_call(
        kern,
        out_shape=jax.ShapeDtypeStruct((n_pad, c_pad), jnp.float32),
        grid_spec=pltpu.PrefetchScalarGridSpec(
            num_scalar_prefetch=0,
            grid=(k_steps + 1, num_tiles),
            in_specs=[
                pl.BlockSpec((tile_n, f_pad), x_map),    # X row tile (k==0 only)
                pl.BlockSpec((f_pad, h_pad), const0),    # W1 resident
                pl.BlockSpec((1, h_pad), const0),        # b1
                pl.BlockSpec((h_pad, c_pad), const0),    # W2 resident
                pl.BlockSpec((1, c_pad), const0),        # b2
                a_spec,                                  # A_prop (resident or streamed)
            ],
            # Constant block index -> output stays resident in VMEM and is
            # written back to HBM exactly once at the end of the grid.
            out_specs=pl.BlockSpec((n_pad, c_pad), const0),
            scratch_shapes=[
                pltpu.VMEM((2, n_pad, c_pad), jnp.bfloat16),   # P ping-pong (bf16)
                pltpu.VMEM((n_pad, c_pad), jnp.float32),       # alpha * Z
            ],
        ),
        compiler_params=pltpu.CompilerParams(
            # Row tiles share the P / alpha*Z / output scratch and every k step
            # depends on the previous one -> both axes sequential on one core.
            dimension_semantics=("arbitrary", "arbitrary"),
            vmem_limit_bytes=vmem_limit,
        ),
    )(xp, w1p, b1p, w2p, b2p, a_prop)

    return out_pad[:n, :c]


# ---------------------------------------------------------------------------
# Plain-JAX setup glue (one-time preprocessing, not the hot path)
# ---------------------------------------------------------------------------
def build_normalized_adjacency(edge_index, n):
    """Dense GCN-style normalization: D^{-1/2} (A + I) D^{-1/2}."""
    src, dst = edge_index[0], edge_index[1]
    adj = jnp.zeros((n, n), jnp.float32).at[dst, src].set(1.0)
    adj = adj + jnp.eye(n, dtype=jnp.float32)
    deg = adj.sum(axis=1)
    d_inv_sqrt = jnp.where(deg > 0, 1.0 / jnp.sqrt(deg), 0.0)
    return d_inv_sqrt[:, None] * adj * d_inv_sqrt[None, :]


def standard_scale(feat):
    """StandardScaler.fit_transform equivalent."""
    mean = feat.mean(axis=0, keepdims=True)
    std = feat.std(axis=0, keepdims=True)
    return (feat - mean) / jnp.where(std > 0, std, 1.0)


def init_linear(key, fan_in, fan_out):
    """PyTorch nn.Linear default init; W returned as [fan_in, fan_out]."""
    kw, kb = jax.random.split(key)
    bound = 1.0 / jnp.sqrt(fan_in)
    w = jax.random.uniform(kw, (fan_in, fan_out), jnp.float32, -bound, bound)
    b = jax.random.uniform(kb, (1, fan_out), jnp.float32, -bound, bound)
    return w, b


if __name__ == "__main__":
    num_nodes = 256
    in_channels = 32
    hidden_channels = 32
    out_channels = 16

    root = jax.random.PRNGKey(0)
    k_feat, k_lin1, k_lin2 = jax.random.split(root, 3)

    # Synthetic node features (stand-in for features.npy), standardized.
    feat = jax.random.normal(k_feat, (num_nodes, in_channels), jnp.float32) * 3.0 + 1.5
    x = standard_scale(feat)

    # Deterministic ring graph (undirected: both directions listed).
    nodes = jnp.arange(num_nodes, dtype=jnp.int32)
    nxt = (nodes + 1) % num_nodes
    edge_index = jnp.stack(
        [jnp.concatenate([nodes, nxt]), jnp.concatenate([nxt, nodes])], axis=0)
    a_hat = build_normalized_adjacency(edge_index, num_nodes)

    w1, b1 = init_linear(k_lin1, in_channels, hidden_channels)
    w2, b2 = init_linear(k_lin2, hidden_channels, out_channels)

    out = appnp_forward(x, w1, b1, w2, b2, a_hat)
    out = jax.block_until_ready(out)
    assert out.shape == (num_nodes, out_channels)

    hp = jax.lax.Precision.HIGHEST

    # Reference 1: mirrors kernel numerics (bf16 A_prop / bf16 P operands,
    # f32 accumulation, f32 alpha*Z) -> tight-ish tolerance.
    h_ref = jnp.maximum(jnp.dot(x, w1, precision=hp) + b1, 0.0)
    z_ref = jnp.dot(h_ref, w2, precision=hp) + b2
    a_q = ((1.0 - ALPHA) * a_hat).astype(jnp.bfloat16).astype(jnp.float32)
    az_ref = ALPHA * z_ref
    p_match = z_ref
    for _ in range(K):
        p_bf = p_match.astype(jnp.bfloat16).astype(jnp.float32)
        p_match = jnp.dot(a_q, p_bf, precision=hp) + az_ref
    assert jnp.allclose(out, p_match, atol=2e-2, rtol=2e-2), (
        float(jnp.max(jnp.abs(out - p_match))))

    # Reference 2: pure-f32 APPNP semantics -> loose tolerance (bf16 A/P noise).
    p_f32 = z_ref
    for _ in range(K):
        p_f32 = (1.0 - ALPHA) * jnp.dot(a_hat, p_f32, precision=hp) + ALPHA * z_ref
    assert jnp.allclose(out, p_f32, atol=5e-2, rtol=5e-2), (
        float(jnp.max(jnp.abs(out - p_f32))))

    print("KERNEL_OK")
</pallas_src>

<mosaic_0001>
module attributes {stable_mosaic.version = 11 : i64} {
  func.func @appnp_kernel(%arg0: i32, %arg1: i32, %arg2: memref<128x128xf32, #tpu.memory_space<vmem>>, %arg3: memref<128x128xf32, #tpu.memory_space<vmem>>, %arg4: memref<1x128xf32, #tpu.memory_space<vmem>>, %arg5: memref<128x128xf32, #tpu.memory_space<vmem>>, %arg6: memref<1x128xf32, #tpu.memory_space<vmem>>, %arg7: memref<256x256xbf16, #tpu.memory_space<vmem>>, %arg8: memref<256x128xf32, #tpu.memory_space<vmem>>, %arg9: memref<2x256x128xbf16, #tpu.memory_space<vmem>>, %arg10: memref<256x128xf32, #tpu.memory_space<vmem>>) attributes {dimension_semantics = [#tpu.dimension_semantics<arbitrary>, #tpu.dimension_semantics<arbitrary>], iteration_bounds = array<i64: 11, 2>, scalar_prefetch = 0 : i64, scratch_operands = 2 : i64, tpu.core_type = #tpu.core_type<tc>, window_params = [{transform_indices = @transform_0, window_bounds = array<i64: 128, 128>}, {pipeline_mode = #tpu.pipeline_mode<synchronous>, transform_indices = @transform_1, window_bounds = array<i64: 128, 128>}, {pipeline_mode = #tpu.pipeline_mode<synchronous>, transform_indices = @transform_2, window_bounds = array<i64: 1, 128>}, {pipeline_mode = #tpu.pipeline_mode<synchronous>, transform_indices = @transform_3, window_bounds = array<i64: 128, 128>}, {pipeline_mode = #tpu.pipeline_mode<synchronous>, transform_indices = @transform_4, window_bounds = array<i64: 1, 128>}, {pipeline_mode = #tpu.pipeline_mode<synchronous>, transform_indices = @transform_5, window_bounds = array<i64: 256, 256>}, {pipeline_mode = #tpu.pipeline_mode<synchronous>, transform_indices = @transform_6, window_bounds = array<i64: 256, 128>}]} {
    %c128_i32 = arith.constant 128 : i32
    %0 = arith.muli %arg1, %c128_i32 : i32
    %1 = tpu.assume_multiple %0, 128 : i32
    %c0_i32 = arith.constant 0 : i32
    %2 = arith.cmpi eq, %arg0, %c0_i32 : i32
    %3 = arith.extui %2 : i1 to i32
    %c0_i32_0 = arith.constant 0 : i32
    %4 = arith.cmpi ne, %3, %c0_i32_0 : i32
    scf.if %4 {
      %c0 = arith.constant 0 : index
      %c0_3 = arith.constant 0 : index
      %8 = vector.load %arg2[%c0, %c0_3] : memref<128x128xf32, #tpu.memory_space<vmem>>, vector<128x128xf32>
      %c0_4 = arith.constant 0 : index
      %c0_5 = arith.constant 0 : index
      %9 = vector.load %arg3[%c0_4, %c0_5] : memref<128x128xf32, #tpu.memory_space<vmem>>, vector<128x128xf32>
      %cst = arith.constant dense<0.000000e+00> : vector<128x128xf32>
      %10 = tpu.matmul %8, %9, %cst {dimension_numbers = #tpu.dot_dimension_numbers<[1], [0], [0], [1], [0, 0, 1, 1], [], []>} : vector<128x128xf32>, vector<128x128xf32>, vector<128x128xf32> -> vector<128x128xf32>
      %c0_6 = arith.constant 0 : index
      %c0_7 = arith.constant 0 : index
      %11 = vector.load %arg4[%c0_6, %c0_7] : memref<1x128xf32, #tpu.memory_space<vmem>>, vector<1x128xf32>
      %12 = vector.broadcast %11 : vector<1x128xf32> to vector<128x128xf32>
      %13 = arith.addf %10, %12 : vector<128x128xf32>
      %cst_8 = arith.constant 0.000000e+00 : f32
      %14 = vector.broadcast %cst_8 : f32 to vector<128x128xf32>
      %15 = arith.maximumf %13, %14 : vector<128x128xf32>
      %c0_9 = arith.constant 0 : index
      %c0_10 = arith.constant 0 : index
      %16 = vector.load %arg5[%c0_9, %c0_10] : memref<128x128xf32, #tpu.memory_space<vmem>>, vector<128x128xf32>
      %cst_11 = arith.constant dense<0.000000e+00> : vector<128x128xf32>
      %17 = tpu.matmul %15, %16, %cst_11 {dimension_numbers = #tpu.dot_dimension_numbers<[1], [0], [0], [1], [0, 0, 1, 1], [], []>} : vector<128x128xf32>, vector<128x128xf32>, vector<128x128xf32> -> vector<128x128xf32>
      %c0_12 = arith.constant 0 : index
      %c0_13 = arith.constant 0 : index
      %18 = vector.load %arg6[%c0_12, %c0_13] : memref<1x128xf32, #tpu.memory_space<vmem>>, vector<1x128xf32>
      %19 = vector.broadcast %18 : vector<1x128xf32> to vector<128x128xf32>
      %20 = arith.addf %17, %19 : vector<128x128xf32>
      %21 = arith.truncf %20 : vector<128x128xf32> to vector<128x128xbf16>
      %c0_14 = arith.constant 0 : index
      %22 = arith.index_cast %1 : i32 to index
      %c0_15 = arith.constant 0 : index
      %23 = vector.load %arg9[%c0_14, %22, %c0_15] : memref<2x256x128xbf16, #tpu.memory_space<vmem>>, vector<1x128x128xbf16>
      %24 = vector.shape_cast %23 : vector<1x128x128xbf16> to vector<128x128xbf16>
      %25 = vector.shape_cast %21 : vector<128x128xbf16> to vector<1x128x128xbf16>
      tpu.vector_store %arg9[%c0_14, %22, %c0_15], %25 {strides = array<i32>} : memref<2x256x128xbf16, #tpu.memory_space<vmem>>, vector<1x128x128xbf16>,
      %cst_16 = arith.constant 1.000000e-01 : f32
      %26 = vector.broadcast %cst_16 : f32 to vector<128x128xf32>
      %27 = arith.mulf %26, %20 : vector<128x128xf32>
      %28 = arith.index_cast %1 : i32 to index
      %c0_17 = arith.constant 0 : index
      %29 = vector.load %arg10[%28, %c0_17] : memref<256x128xf32, #tpu.memory_space<vmem>>, vector<128x128xf32>
      tpu.vector_store %arg10[%28, %c0_17], %27 {strides = array<i32>} : memref<256x128xf32, #tpu.memory_space<vmem>>, vector<128x128xf32>,
    } else {
    }
    %c0_i32_1 = arith.constant 0 : i32
    %5 = arith.cmpi sgt, %arg0, %c0_i32_1 : i32
    %6 = arith.extui %5 : i1 to i32
    %c0_i32_2 = arith.constant 0 : i32
    %7 = arith.cmpi ne, %6, %c0_i32_2 : i32
    scf.if %7 {
      %c1_i32 = arith.constant 1 : i32
      %8 = arith.addi %arg0, %c1_i32 : i32
      %c2_i32 = arith.constant 2 : i32
      %c0_i32_3 = arith.constant 0 : i32
      %9 = arith.cmpi eq, %c2_i32, %c0_i32_3 : i32
      %c1_i32_4 = arith.constant 1 : i32
      %10 = arith.select %9, %c1_i32_4, %c2_i32 : i32
      %11 = arith.remsi %8, %10 : i32
      %c0_i32_5 = arith.constant 0 : i32
      %12 = arith.cmpi ne, %11, %c0_i32_5 : i32
      %c0_i32_6 = arith.constant 0 : i32
      %13 = arith.cmpi slt, %11, %c0_i32_6 : i32
      %c0_i32_7 = arith.constant 0 : i32
      %14 = arith.cmpi slt, %10, %c0_i32_7 : i32
      %15 = arith.xori %13, %14 : i1
      %16 = arith.andi %15, %12 : i1
      %17 = arith.addi %11, %10 : i32
      %18 = arith.select %16, %17, %11 : i32
      %19 = arith.index_cast %18 : i32 to index
      %c0 = arith.constant 0 : index
      %c0_8 = arith.constant 0 : index
      %20 = vector.load %arg9[%19, %c0, %c0_8] : memref<2x256x128xbf16, #tpu.memory_space<vmem>>, vector<1x256x128xbf16>
      %21 = vector.shape_cast %20 : vector<1x256x128xbf16> to vector<256x128xbf16>
      %22 = arith.index_cast %1 : i32 to index
      %c0_9 = arith.constant 0 : index
      %23 = vector.load %arg7[%22, %c0_9] : memref<256x256xbf16, #tpu.memory_space<vmem>>, vector<128x256xbf16>
      %cst = arith.constant dense<0.000000e+00> : vector<128x128xf32>
      %24 = tpu.matmul %23, %21, %cst {dimension_numbers = #tpu.dot_dimension_numbers<[1], [0], [0], [1], [0, 0, 1, 1], [], []>} : vector<128x256xbf16>, vector<256x128xbf16>, vector<128x128xf32> -> vector<128x128xf32>
      %25 = arith.index_cast %1 : i32 to index
      %c0_10 = arith.constant 0 : index
      %26 = vector.load %arg10[%25, %c0_10] : memref<256x128xf32, #tpu.memory_space<vmem>>, vector<128x128xf32>
      %27 = arith.addf %24, %26 : vector<128x128xf32>
      %c2_i32_11 = arith.constant 2 : i32
      %c0_i32_12 = arith.constant 0 : i32
      %28 = arith.cmpi eq, %c2_i32_11, %c0_i32_12 : i32
      %c1_i32_13 = arith.constant 1 : i32
      %29 = arith.select %28, %c1_i32_13, %c2_i32_11 : i32
      %30 = arith.remsi %arg0, %29 : i32
      %c0_i32_14 = arith.constant 0 : i32
      %31 = arith.cmpi ne, %30, %c0_i32_14 : i32
      %c0_i32_15 = arith.constant 0 : i32
      %32 = arith.cmpi slt, %30, %c0_i32_15 : i32
      %c0_i32_16 = arith.constant 0 : i32
      %33 = arith.cmpi slt, %29, %c0_i32_16 : i32
      %34 = arith.xori %32, %33 : i1
      %35 = arith.andi %34, %31 : i1
      %36 = arith.addi %30, %29 : i32
      %37 = arith.select %35, %36, %30 : i32
      %c0_i32_17 = arith.constant 0 : i32
      %38 = arith.cmpi eq, %37, %c0_i32_17 : i32
      %39 = arith.extui %38 : i1 to i32
      %c0_i32_18 = arith.constant 0 : i32
      %40 = arith.cmpi ne, %39, %c0_i32_18 : i32
      scf.if %40 {
        %47 = arith.truncf %27 : vector<128x128xf32> to vector<128x128xbf16>
        %c0_22 = arith.constant 0 : index
        %48 = arith.index_cast %1 : i32 to index
        %c0_23 = arith.constant 0 : index
        %49 = vector.load %arg9[%c0_22, %48, %c0_23] : memref<2x256x128xbf16, #tpu.memory_space<vmem>>, vector<1x128x128xbf16>
        %50 = vector.shape_cast %49 : vector<1x128x128xbf16> to vector<128x128xbf16>
        %51 = vector.shape_cast %47 : vector<128x128xbf16> to vector<1x128x128xbf16>
        tpu.vector_store %arg9[%c0_22, %48, %c0_23], %51 {strides = array<i32>} : memref<2x256x128xbf16, #tpu.memory_space<vmem>>, vector<1x128x128xbf16>,
      } else {
      }
      %c1_i32_19 = arith.constant 1 : i32
      %41 = arith.cmpi eq, %37, %c1_i32_19 : i32
      %42 = arith.extui %41 : i1 to i32
      %c0_i32_20 = arith.constant 0 : i32
      %43 = arith.cmpi ne, %42, %c0_i32_20 : i32
      scf.if %43 {
        %47 = arith.truncf %27 : vector<128x128xf32> to vector<128x128xbf16>
        %c1 = arith.constant 1 : index
        %48 = arith.index_cast %1 : i32 to index
        %c0_22 = arith.constant 0 : index
        %49 = vector.load %arg9[%c1, %48, %c0_22] : memref<2x256x128xbf16, #tpu.memory_space<vmem>>, vector<1x128x128xbf16>
        %50 = vector.shape_cast %49 : vector<1x128x128xbf16> to vector<128x128xbf16>
        %51 = vector.shape_cast %47 : vector<128x128xbf16> to vector<1x128x128xbf16>
        tpu.vector_store %arg9[%c1, %48, %c0_22], %51 {strides = array<i32>} : memref<2x256x128xbf16, #tpu.memory_space<vmem>>, vector<1x128x128xbf16>,
      } else {
      }
      %c10_i32 = arith.constant 10 : i32
      %44 = arith.cmpi eq, %arg0, %c10_i32 : i32
      %45 = arith.extui %44 : i1 to i32
      %c0_i32_21 = arith.constant 0 : i32
      %46 = arith.cmpi ne, %45, %c0_i32_21 : i32
      scf.if %46 {
        %47 = arith.index_cast %1 : i32 to index
        %c0_22 = arith.constant 0 : index
        %48 = vector.load %arg8[%47, %c0_22] : memref<256x128xf32, #tpu.memory_space<vmem>>, vector<128x128xf32>
        tpu.vector_store %arg8[%47, %c0_22], %27 {strides = array<i32>} : memref<256x128xf32, #tpu.memory_space<vmem>>, vector<128x128xf32>,
      } else {
      }
    } else {
    }
    return
  }
  func.func @transform_0(%arg0: i32, %arg1: i32) -> (i32, i32) {
    %c1_i32 = arith.constant 1 : i32
    %0 = arith.minsi %arg0, %c1_i32 : i32
    %c1_i32_0 = arith.constant 1 : i32
    %1 = arith.subi %c1_i32_0, %0 : i32
    %2 = arith.muli %arg1, %1 : i32
    %c0_i32 = arith.constant 0 : i32
    %c0_i32_1 = arith.constant 0 : i32
    return %2, %c0_i32 : i32, i32
  }
  func.func @transform_1(%arg0: i32, %arg1: i32) -> (i32, i32) {
    %c0_i32 = arith.constant 0 : i32
    %c0_i32_0 = arith.constant 0 : i32
    %c0_i32_1 = arith.constant 0 : i32
    return %c0_i32, %c0_i32_0 : i32, i32
  }
  func.func @transform_2(%arg0: i32, %arg1: i32) -> (i32, i32) {
    %c0_i32 = arith.constant 0 : i32
    %c0_i32_0 = arith.constant 0 : i32
    %c0_i32_1 = arith.constant 0 : i32
    return %c0_i32, %c0_i32_0 : i32, i32
  }
  func.func @transform_3(%arg0: i32, %arg1: i32) -> (i32, i32) {
    %c0_i32 = arith.constant 0 : i32
    %c0_i32_0 = arith.constant 0 : i32
    %c0_i32_1 = arith.constant 0 : i32
    return %c0_i32, %c0_i32_0 : i32, i32
  }
  func.func @transform_4(%arg0: i32, %arg1: i32) -> (i32, i32) {
    %c0_i32 = arith.constant 0 : i32
    %c0_i32_0 = arith.constant 0 : i32
    %c0_i32_1 = arith.constant 0 : i32
    return %c0_i32, %c0_i32_0 : i32, i32
  }
  func.func @transform_5(%arg0: i32, %arg1: i32) -> (i32, i32) {
    %c0_i32 = arith.constant 0 : i32
    %c0_i32_0 = arith.constant 0 : i32
    %c0_i32_1 = arith.constant 0 : i32
    return %c0_i32, %c0_i32_0 : i32, i32
  }
  func.func @transform_6(%arg0: i32, %arg1: i32) -> (i32, i32) {
    %c0_i32 = arith.constant 0 : i32
    %c0_i32_0 = arith.constant 0 : i32
    %c0_i32_1 = arith.constant 0 : i32
    return %c0_i32, %c0_i32_0 : i32, i32
  }
}

</mosaic_0001>

<llo_original>
// kernel: tpu_custom_call.1
$region0: #{tpu_custom_call.1}
  #allocation0 [shape = 'u32[]', space=smem, size = 0x4, offset = 0x4, fixed_abs, tag = 'smem constant byte address 0x4 - core index']
  #allocation1 [shape = 'u32[144,128]{1,0:T(1,128)}', space=vmem, size = 0x12000, scoped, tag = 'internal scratch']
  #allocation2 [shape = 'bf16[2,256,128]{2,1,0:T(16,128)(2,1)}', space=vmem, size = 0x20000, scoped, tag = 'scratch operand']
  #allocation3 [shape = 'f32[256,128]{1,0:T(8,128)}', space=vmem, size = 0x20000, scoped, tag = 'scratch operand']
  %s0 = inlined_call_operand.hbm [shape: f32[256,128], index: 0, kind: input, shape index: {}]
  %s1 = inlined_call_operand.hbm [shape: f32[128,128], index: 1, kind: input, shape index: {}]
  %s2 = inlined_call_operand.hbm [shape: f32[1,128], index: 2, kind: input, shape index: {}]
  %s3 = inlined_call_operand.hbm [shape: f32[128,128], index: 3, kind: input, shape index: {}]
  %s4 = inlined_call_operand.hbm [shape: f32[1,128], index: 4, kind: input, shape index: {}]
  %s5 = inlined_call_operand.hbm [shape: bf16[256,256], index: 5, kind: input, shape index: {}]
  %s6 = inlined_call_operand.hbm [shape: f32[256,128], index: 6, kind: output, shape index: {}]
  %s7 = sld [smem:[#allocation0]]
  $region101: #{tpu_custom_call.1} parent=0
    _
  %s9 = ssub.s32 1, %s7
  %s10 = scalar_select 0, %s9, %s7
  $region1: #{tpu_custom_call.1} parent=0
    #allocation4 [shape = 'u8[131072]{0}', space=vmem, size = 0x20000, scoped, tag = 'input window, operand 0']
    #allocation5 [shape = 's32[2]{0}', space=sflag, size = 0x8, scoped, tag = 'scoped memory for tpu_custom_call.1']
    #allocation6 [shape = 's32[2]{0}', space=sflag, size = 0x8, scoped, tag = 'scoped memory for tpu_custom_call.1']
    #allocation7 [shape = 'u8[65536]{0}', space=vmem, size = 0x10000, scoped, tag = 'input window, operand 1, single buffered']
    #allocation8 [shape = 's32[1]{0}', space=sflag, size = 0x4, scoped, tag = 'scoped memory for tpu_custom_call.1']
    #allocation9 [shape = 'u8[512]{0}', space=vmem, size = 0x400, scoped, tag = 'input window, operand 2, single buffered']
    #allocation10 [shape = 'u8[65536]{0}', space=vmem, size = 0x10000, scoped, tag = 'input window, operand 3, single buffered']
    #allocation11 [shape = 's32[1]{0}', space=sflag, size = 0x4, scoped, tag = 'scoped memory for tpu_custom_call.1']
    #allocation12 [shape = 'u8[512]{0}', space=vmem, size = 0x400, scoped, tag = 'input window, operand 4, single buffered']
    #allocation13 [shape = 'u8[131072]{0}', space=vmem, size = 0x20000, scoped, tag = 'input window, operand 5, single buffered']
    #allocation14 [shape = 's32[1]{0}', space=sflag, size = 0x4, scoped, tag = 'scoped memory for tpu_custom_call.1']
    #allocation15 [shape = 'u8[131072]{0}', space=vmem, size = 0x20000, scoped, tag = 'output window, operand 0, single buffered']
    %11 = vsyncpa [#allocation5], 0
    %s12 = scalar_lea.sflag [#allocation5], 1
    %13 = vsyncpa %s12, 0
    %14 = vsyncpa [#allocation8], 0
    %15 = vsyncpa [#allocation11], 0
    %16 = vsyncpa [#allocation14], 0
    %17 = vsyncpa [#allocation6], 0
    loop: start=0, step=1, limit=24
    $region2: #{tpu_custom_call.1} parent=1 // loop_pre_header
      _
    $region3: #{tpu_custom_call.1} parent=1 // loop_header
      %s19 = sphi 0, %s23
      %p20 = scmp.ge.s32.totalorder %s19, 24
      %s26 = sphi 0, %s38
      %s27 = sphi 0, %s34
      %s28 = sphi 0, %s26
      %s29 = sphi 0, %s27
      %s30 = sphi 0, %s28
      %s31 = sphi 0, %s29
      %s49 = sphi 0, %s51
      %s52 = sphi 0, %s49
      %s53 = sphi 0, %s52
      %s69 = sphi 0, %s53
      %s73 = sphi 0, %s73
      %s75 = sphi 0, %s73
      %s76 = sphi 0, %s75
      %s90 = sphi 0, %s76
      %s94 = sphi 0, %s94
      %s96 = sphi 0, %s94
      %s97 = sphi 0, %s96
      %s111 = sphi 0, %s97
      %s115 = sphi 0, %s115
      %s117 = sphi 0, %s115
      %s118 = sphi 0, %s117
      %s132 = sphi 0, %s118
      %s136 = sphi 0, %s136
      %s138 = sphi 0, %s136
      %s139 = sphi 0, %s138
      %s153 = sphi 0, %s139
      %s157 = sphi 0, %s157
      %s159 = sphi 0, %s157
      %s160 = sphi 0, %s159
      %s174 = sphi 0, %s160
      %s178 = sphi 0, %s178
      %s180 = sphi 0, %s178
      %s181 = sphi 0, %s180
      %s195 = sphi 0, %s181
    $region4: #{tpu_custom_call.1} parent=1 // loop_header_branch
      %22 = sbr.rel (%p20) target = $region8
    $region5: #{tpu_custom_call.1} parent=1 // loop_body
      %s24 = ssub.s32 %s19, 1
      %s25 = ssub.s32 %s19, 2
      %s32 = sadd.s32 1, %s27
      %p33 = scmp.ge.s32.totalorder %s32, 2
      %s34 = scalar_select %p33, 0, %s32
      %s35 = sadd.s32 1, %s26
      %s36 = scalar_select %p33, %s35, %s26
      %p37 = scmp.ge.s32.totalorder %s36, 11
      %s38 = scalar_select %p37, 0, %s36
      %p39 = scmp.lt.s32.totalorder %s26, 1
      %s40 = scalar_select %p39, %s26, 1
      %s41 = ssub.s32 1, %s40
      %s42 = smul.u32 %s27, %s41
      %p43 = scmp.lt.s32.totalorder %s38, 1
      %s44 = scalar_select %p43, %s38, 1
      %s45 = ssub.s32 1, %s44
      %s46 = smul.u32 %s34, %s45
      %s47 = ssub.s32 %s42, %s46
      %p48 = scmp.eq.s32.totalorder %s47, 0
      %s50 = sadd.s32 %s49, 1
      %s51 = scalar_select %p48, %s49, %s50
      %p54 = pneg %p48
      %p55 = scmp.eq.s32.totalorder %s19, 21
      %p56 = por %p54, %p55
      %p57 = scmp.ne.s32.totalorder %s49, %s52
      %p58 = scmp.eq.s32.totalorder %s19, 0
      %p59 = por %p57, %p58
      %p60 = scmp.ne.s32.totalorder %s49, %s52
      %p61 = scmp.eq.s32.totalorder %s24, 21
      %p62 = por %p60, %p61
      %p63 = scmp.ne.s32.totalorder %s52, %s53
      %p64 = scmp.eq.s32.totalorder %s24, 0
      %p65 = por %p63, %p64
      %p66 = scmp.ne.s32.totalorder %s52, %s53
      %p67 = scmp.eq.s32.totalorder %s25, 21
      %p68 = por %p66, %p67
      %p70 = scmp.ne.s32.totalorder %s53, %s69
      %p71 = scmp.eq.s32.totalorder %s25, 0
      %p72 = por %p70, %p71
      %s74 = sadd.s32 %s73, 1
      %p77 = scmp.eq.s32.totalorder %s19, 21
      %p78 = scmp.ne.s32.totalorder %s73, %s75
      %p79 = scmp.eq.s32.totalorder %s19, 0
      %p80 = por %p78, %p79
      %p81 = scmp.ne.s32.totalorder %s73, %s75
      %p82 = scmp.eq.s32.totalorder %s24, 21
      %p83 = por %p81, %p82
      %p84 = scmp.ne.s32.totalorder %s75, %s76
      %p85 = scmp.eq.s32.totalorder %s24, 0
      %p86 = por %p84, %p85
      %p87 = scmp.ne.s32.totalorder %s75, %s76
      %p88 = scmp.eq.s32.totalorder %s25, 21
      %p89 = por %p87, %p88
      %p91 = scmp.ne.s32.totalorder %s76, %s90
      %p92 = scmp.eq.s32.totalorder %s25, 0
      %p93 = por %p91, %p92
      %s95 = sadd.s32 %s94, 1
      %p98 = scmp.eq.s32.totalorder %s19, 21
      %p99 = scmp.ne.s32.totalorder %s94, %s96
      %p100 = scmp.eq.s32.totalorder %s19, 0
      %p101 = por %p99, %p100
      %p102 = scmp.ne.s32.totalorder %s94, %s96
      %p103 = scmp.eq.s32.totalorder %s24, 21
      %p104 = por %p102, %p103
      %p105 = scmp.ne.s32.totalorder %s96, %s97
      %p106 = scmp.eq.s32.totalorder %s24, 0
      %p107 = por %p105, %p106
      %p108 = scmp.ne.s32.totalorder %s96, %s97
      %p109 = scmp.eq.s32.totalorder %s25, 21
      %p110 = por %p108, %p109
      %p112 = scmp.ne.s32.totalorder %s97, %s111
      %p113 = scmp.eq.s32.totalorder %s25, 0
      %p114 = por %p112, %p113
      %s116 = sadd.s32 %s115, 1
      %p119 = scmp.eq.s32.totalorder %s19, 21
      %p120 = scmp.ne.s32.totalorder %s115, %s117
      %p121 = scmp.eq.s32.totalorder %s19, 0
      %p122 = por %p120, %p121
      %p123 = scmp.ne.s32.totalorder %s115, %s117
      %p124 = scmp.eq.s32.totalorder %s24, 21
      %p125 = por %p123, %p124
      %p126 = scmp.ne.s32.totalorder %s117, %s118
      %p127 = scmp.eq.s32.totalorder %s24, 0
      %p128 = por %p126, %p127
      %p129 = scmp.ne.s32.totalorder %s117, %s118
      %p130 = scmp.eq.s32.totalorder %s25, 21
      %p131 = por %p129, %p130
      %p133 = scmp.ne.s32.totalorder %s118, %s132
      %p134 = scmp.eq.s32.totalorder %s25, 0
      %p135 = por %p133, %p134
      %s137 = sadd.s32 %s136, 1
      %p140 = scmp.eq.s32.totalorder %s19, 21
      %p141 = scmp.ne.s32.totalorder %s136, %s138
      %p142 = scmp.eq.s32.totalorder %s19, 0
      %p143 = por %p141, %p142
      %p144 = scmp.ne.s32.totalorder %s136, %s138
      %p145 = scmp.eq.s32.totalorder %s24, 21
      %p146 = por %p144, %p145
      %p147 = scmp.ne.s32.totalorder %s138, %s139
      %p148 = scmp.eq.s32.totalorder %s24, 0
      %p149 = por %p147, %p148
      %p150 = scmp.ne.s32.totalorder %s138, %s139
      %p151 = scmp.eq.s32.totalorder %s25, 21
      %p152 = por %p150, %p151
      %p154 = scmp.ne.s32.totalorder %s139, %s153
      %p155 = scmp.eq.s32.totalorder %s25, 0
      %p156 = por %p154, %p155
      %s158 = sadd.s32 %s157, 1
      %p161 = scmp.eq.s32.totalorder %s19, 21
      %p162 = scmp.ne.s32.totalorder %s157, %s159
      %p163 = scmp.eq.s32.totalorder %s19, 0
      %p164 = por %p162, %p163
      %p165 = scmp.ne.s32.totalorder %s157, %s159
      %p166 = scmp.eq.s32.totalorder %s24, 21
      %p167 = por %p165, %p166
      %p168 = scmp.ne.s32.totalorder %s159, %s160
      %p169 = scmp.eq.s32.totalorder %s24, 0
      %p170 = por %p168, %p169
      %p171 = scmp.ne.s32.totalorder %s159, %s160
      %p172 = scmp.eq.s32.totalorder %s25, 21
      %p173 = por %p171, %p172
      %p175 = scmp.ne.s32.totalorder %s160, %s174
      %p176 = scmp.eq.s32.totalorder %s25, 0
      %p177 = por %p175, %p176
      %s179 = sadd.s32 %s178, 1
      %p182 = scmp.eq.s32.totalorder %s19, 21
      %p183 = scmp.ne.s32.totalorder %s178, %s180
      %p184 = scmp.eq.s32.totalorder %s19, 0
      %p185 = por %p183, %p184
      %p186 = scmp.ne.s32.totalorder %s178, %s180
      %p187 = scmp.eq.s32.totalorder %s24, 21
      %p188 = por %p186, %p187
      %p189 = scmp.ne.s32.totalorder %s180, %s181
      %p190 = scmp.eq.s32.totalorder %s24, 0
      %p191 = por %p189, %p190
      %p192 = scmp.ne.s32.totalorder %s180, %s181
      %p193 = scmp.eq.s32.totalorder %s25, 21
      %p194 = por %p192, %p193
      %p196 = scmp.ne.s32.totalorder %s181, %s195
      %p197 = scmp.eq.s32.totalorder %s25, 0
      %p198 = por %p196, %p197
      %p199 = scmp.le.s32.totalorder 1, %s19
      %p200 = scmp.lt.s32.totalorder %s19, 23
      %p201 = pnand %p199, %p200
      %p202 = pneg %p201
      // Predicated region
      $region9: #{tpu_custom_call.1} parent=5 // pred_check
        _
      $region10: #{tpu_custom_call.1} parent=5 // pred_check_branch
        %204 = sbr.rel (%p201) target = $region12
      $region11: #{tpu_custom_call.1} parent=5 // pred_region
        %s205 = ssub.s32 %s19, 1
        // Predicated region
        $region13: #{tpu_custom_call.1} parent=11 // pred_check
          %p206 = pneg %p86
        $region14: #{tpu_custom_call.1} parent=11 // pred_check_branch
          %208 = sbr.rel (%p206) target = $region16
        $region15: #{tpu_custom_call.1} parent=11 // pred_region
          %s210 = ssub.s32 2048, 2048
          %211 = vsyncadd [#allocation8], %s210
          %s212 = sshll.u32 [#allocation7], 4
          %s213 = int_to_ptr.vmem [resolvable:$true] %s212
          %218 = dma.hbm_to_vmem [thread:$0]  %s1, 2048, %s213, [#allocation8], 128, 128, 8
        $region16: #{tpu_custom_call.1} parent=11 // pred_fallthru
          _
        // Predicated region
        $region17: #{tpu_custom_call.1} parent=11 // pred_check
          %p219 = pneg %p107
        $region18: #{tpu_custom_call.1} parent=11 // pred_check_branch
          %221 = sbr.rel (%p219) target = $region20
        $region19: #{tpu_custom_call.1} parent=11 // pred_region
          %s223 = ssub.s32 16, 16
          %224 = vsyncadd [#allocation8], %s223
          %s226 = sshll.u32 [#allocation9], 4
          %s227 = int_to_ptr.vmem [resolvable:$true] %s226
          %229 = dma.hbm_to_vmem [thread:$0]  %s2, 16, %s227, [#allocation8]
        $region20: #{tpu_custom_call.1} parent=11 // pred_fallthru
          _
        // Predicated region
        $region21: #{tpu_custom_call.1} parent=11 // pred_check
          %p230 = pneg %p128
        $region22: #{tpu_custom_call.1} parent=11 // pred_check_branch
          %232 = sbr.rel (%p230) target = $region24
        $region23: #{tpu_custom_call.1} parent=11 // pred_region
          %s234 = ssub.s32 2048, 2048
          %235 = vsyncadd [#allocation11], %s234
          %s236 = sshll.u32 [#allocation10], 4
          %s237 = int_to_ptr.vmem [resolvable:$true] %s236
          %242 = dma.hbm_to_vmem [thread:$0]  %s3, 2048, %s237, [#allocation11], 128, 128, 8
        $region24: #{tpu_custom_call.1} parent=11 // pred_fallthru
          _
        // Predicated region
        $region25: #{tpu_custom_call.1} parent=11 // pred_check
          %p243 = pneg %p149
        $region26: #{tpu_custom_call.1} parent=11 // pred_check_branch
          %245 = sbr.rel (%p243) target = $region28
        $region27: #{tpu_custom_call.1} parent=11 // pred_region
          %s247 = ssub.s32 16, 16
          %248 = vsyncadd [#allocation11], %s247
          %s250 = sshll.u32 [#allocation12], 4
          %s251 = int_to_ptr.vmem [resolvable:$true] %s250
          %253 = dma.hbm_to_vmem [thread:$0]  %s4, 16, %s251, [#allocation11]
        $region28: #{tpu_custom_call.1} parent=11 // pred_fallthru
          _
        // Predicated region
        $region29: #{tpu_custom_call.1} parent=11 // pred_check
          %p254 = pneg %p170
        $region30: #{tpu_custom_call.1} parent=11 // pred_check_branch
          %256 = sbr.rel (%p254) target = $region32
        $region31: #{tpu_custom_call.1} parent=11 // pred_region
          %s258 = ssub.s32 4096, 4096
          %259 = vsyncadd [#allocation14], %s258
          %s260 = sshll.u32 [#allocation13], 4
          %s261 = int_to_ptr.vmem [resolvable:$true] %s260
          %266 = dma.hbm_to_vmem [thread:$0]  %s5, 4096, %s261, [#allocation14], 128, 128, 8
        $region32: #{tpu_custom_call.1} parent=11 // pred_fallthru
          _
      $region12: #{tpu_custom_call.1} parent=5 // pred_fallthru
        _
      %p267 = scmp.lt.s32.totalorder %s19, 22
      // Predicated region
      $region33: #{tpu_custom_call.1} parent=5 // pred_check
        %p268 = pneg %p267
      $region34: #{tpu_custom_call.1} parent=5 // pred_check_branch
        %270 = sbr.rel (%p268) target = $region36
      $region35: #{tpu_custom_call.1} parent=5 // pred_region
        // Predicated region
        $region37: #{tpu_custom_call.1} parent=35 // pred_check
          %p271 = pneg %p59
        $region38: #{tpu_custom_call.1} parent=35 // pred_check_branch
          %273 = sbr.rel (%p271) target = $region40
        $region39: #{tpu_custom_call.1} parent=35 // pred_region
          %s274 = sand.u32 %s49, 1
          %s275 = scalar_lea.sflag [#allocation5], %s274
          %s276 = sand.u32 %s49, 1
          %s277 = smul.addr %s276, 128
          %s278 = scalar_lea.vmem [#allocation4], %s277
          %p279 = scmp.lt.s32.totalorder %s26, 1
          %s280 = scalar_select %p279, %s26, 1
          %s281 = ssub.s32 1, %s280
          %s282 = smul.u32 %s27, %s281
          %s283 = smul.u32 16, %s282
          %s285 = ssub.s32 2048, 2048
          %286 = vsyncadd %s275, %s285
          %s287 = smul.addr %s283, 128
          %s288 = scalar_lea.hbm %s0, %s287
          %s289 = sshll.u32 %s278, 4
          %s290 = int_to_ptr.vmem [resolvable:$true] %s289
          %295 = dma.hbm_to_vmem [thread:$0]  %s288, 2048, %s290, %s275, 128, 128, 8
        $region40: #{tpu_custom_call.1} parent=35 // pred_fallthru
          _
      $region36: #{tpu_custom_call.1} parent=5 // pred_fallthru
        _
      %p296 = scmp.le.s32.totalorder 1, %s19
      %p297 = scmp.lt.s32.totalorder %s19, 23
      %p298 = pnand %p296, %p297
      %p299 = pneg %p298
      // Predicated region
      $region41: #{tpu_custom_call.1} parent=5 // pred_check
        _
      $region42: #{tpu_custom_call.1} parent=5 // pred_check_branch
        %301 = sbr.rel (%p298) target = $region44
      $region43: #{tpu_custom_call.1} parent=5 // pred_region
        %s302 = ssub.s32 %s19, 1
        %s303 = sand.u32 %s52, 1
        %s304 = scalar_lea.sflag [#allocation5], %s303
        %s305 = sand.u32 %s52, 1
        %s306 = smul.addr %s305, 128
        %s307 = scalar_lea.vmem [#allocation4], %s306
        // Predicated region
        $region45: #{tpu_custom_call.1} parent=43 // pred_check
          %p308 = pneg %p65
        $region46: #{tpu_custom_call.1} parent=43 // pred_check_branch
          %310 = sbr.rel (%p308) target = $region48
        $region47: #{tpu_custom_call.1} parent=43 // pred_region
          %311 = dma.done %s304, 2048
        $region48: #{tpu_custom_call.1} parent=43 // pred_fallthru
          _
        // Predicated region
        $region49: #{tpu_custom_call.1} parent=43 // pred_check
          %p312 = pneg %p86
        $region50: #{tpu_custom_call.1} parent=43 // pred_check_branch
          %314 = sbr.rel (%p312) target = $region52
        $region51: #{tpu_custom_call.1} parent=43 // pred_region
          %315 = dma.done [#allocation8], 2048
        $region52: #{tpu_custom_call.1} parent=43 // pred_fallthru
          _
        // Predicated region
        $region53: #{tpu_custom_call.1} parent=43 // pred_check
          %p316 = pneg %p107
        $region54: #{tpu_custom_call.1} parent=43 // pred_check_branch
          %318 = sbr.rel (%p316) target = $region56
        $region55: #{tpu_custom_call.1} parent=43 // pred_region
          %319 = dma.done [#allocation8], 16
        $region56: #{tpu_custom_call.1} parent=43 // pred_fallthru
          _
        // Predicated region
        $region57: #{tpu_custom_call.1} parent=43 // pred_check
          %p320 = pneg %p128
        $region58: #{tpu_custom_call.1} parent=43 // pred_check_branch
          %322 = sbr.rel (%p320) target = $region60
        $region59: #{tpu_custom_call.1} parent=43 // pred_region
          %323 = dma.done [#allocation11], 2048
        $region60: #{tpu_custom_call.1} parent=43 // pred_fallthru
          _
        // Predicated region
        $region61: #{tpu_custom_call.1} parent=43 // pred_check
          %p324 = pneg %p149
        $region62: #{tpu_custom_call.1} parent=43 // pred_check_branch
          %326 = sbr.rel (%p324) target = $region64
        $region63: #{tpu_custom_call.1} parent=43 // pred_region
          %327 = dma.done [#allocation11], 16
        $region64: #{tpu_custom_call.1} parent=43 // pred_fallthru
          _
        // Predicated region
        $region65: #{tpu_custom_call.1} parent=43 // pred_check
          %p328 = pneg %p170
        $region66: #{tpu_custom_call.1} parent=43 // pred_check_branch
          %330 = sbr.rel (%p328) target = $region68
        $region67: #{tpu_custom_call.1} parent=43 // pred_region
          %331 = dma.done [#allocation14], 4096
        $region68: #{tpu_custom_call.1} parent=43 // pred_fallthru
          _
        %s332 = sand.u32 %s52, 1
        %s333 = scalar_lea.sflag [#allocation5], %s332
        %s334 = sand.u32 %s52, 1
        %s335 = smul.addr %s334, 128
        %s336 = scalar_lea.vmem [#allocation4], %s335
        %p337 = pneg %p65
        %p338 = pneg %p62
        %p339 = pneg %p86
        %p340 = pneg %p83
        %p341 = pneg %p107
        %p342 = pneg %p104
        %p343 = pneg %p128
        %p344 = pneg %p125
        %p345 = pneg %p149
        %p346 = pneg %p146
        %p347 = pneg %p170
        %p348 = pneg %p167
        %p349 = pneg %p191
        %p350 = pneg %p188
        %p351 = scmp.lt.s32.totalorder %s28, 1
        %s352 = scalar_select %p351, %s28, 1
        %s353 = ssub.s32 1, %s352
        %s354 = smul.u32 %s29, %s353
        %s355 = smul.u32 16, %s354
        %s357 = smul.u32 %s29, 128
        %p358 = scmp.eq.s32.totalorder %s28, 0
        // Predicated region
        $region69: #{tpu_custom_call.1} parent=43 // pred_check
          %p359 = pneg %p358
        $region70: #{tpu_custom_call.1} parent=43 // pred_check_branch
          %361 = sbr.rel (%p359) target = $region72
        $region71: #{tpu_custom_call.1} parent=43 // pred_region
          %v362 = vld [vmem:[%s307] sm:$0xff]
          %v363 = vld [vmem:[%s307 + $0x8] sm:$0xff]
          %v364 = vld [vmem:[%s307 + $0x10] sm:$0xff]
          %v365 = vld [vmem:[%s307 + $0x18] sm:$0xff]
          %v366 = vld [vmem:[%s307 + $0x20] sm:$0xff]
          %v367 = vld [vmem:[%s307 + $0x28] sm:$0xff]
          %v368 = vld [vmem:[%s307 + $0x30] sm:$0xff]
          %v369 = vld [vmem:[%s307 + $0x38] sm:$0xff]
          %v370 = vld [vmem:[%s307 + $0x40] sm:$0xff]
          %v371 = vld [vmem:[%s307 + $0x48] sm:$0xff]
          %v372 = vld [vmem:[%s307 + $0x50] sm:$0xff]
          %v373 = vld [vmem:[%s307 + $0x58] sm:$0xff]
          %v374 = vld [vmem:[%s307 + $0x60] sm:$0xff]
          %v375 = vld [vmem:[%s307 + $0x68] sm:$0xff]
          %v376 = vld [vmem:[%s307 + $0x70] sm:$0xff]
          %v377 = vld [vmem:[%s307 + $0x78] sm:$0xff]
          %v378 = vld [vmem:[#allocation7] sm:$0xff]
          %v379 = vld [vmem:[#allocation7 + $0x8] sm:$0xff]
          %v380 = vld [vmem:[#allocation7 + $0x10] sm:$0xff]
          %v381 = vld [vmem:[#allocation7 + $0x18] sm:$0xff]
          %v382 = vld [vmem:[#allocation7 + $0x20] sm:$0xff]
          %v383 = vld [vmem:[#allocation7 + $0x28] sm:$0xff]
          %v384 = vld [vmem:[#allocation7 + $0x30] sm:$0xff]
          %v385 = vld [vmem:[#allocation7 + $0x38] sm:$0xff]
          %v386 = vld [vmem:[#allocation7 + $0x40] sm:$0xff]
          %v387 = vld [vmem:[#allocation7 + $0x48] sm:$0xff]
          %v388 = vld [vmem:[#allocation7 + $0x50] sm:$0xff]
          %v389 = vld [vmem:[#allocation7 + $0x58] sm:$0xff]
          %v390 = vld [vmem:[#allocation7 + $0x60] sm:$0xff]
          %v391 = vld [vmem:[#allocation7 + $0x68] sm:$0xff]
          %v392 = vld [vmem:[#allocation7 + $0x70] sm:$0xff]
          %v393 = vld [vmem:[#allocation7 + $0x78] sm:$0xff]
          %v394 = vld [vmem:[#allocation9] sm:$0x1]
          %v396 = vlaneseq
          %v397 = vshrl.u32 %v396, 7
          %v398 = vsub.s32 0, %v397
          %v399 = vrot.slane %v394, %v398
          %401 = vmatprep.subr.mxu0 0.0
          %402 = vmatpush1.msra.mxu0 %v378
          %403 = vmatprep.subr.mxu0 0.0
          %404 = vmatpush1.msra.mxu0 %v379
          %405 = vmatprep.subr.mxu0 0.0
          %406 = vmatpush1.msra.mxu0 %v380
          %407 = vmatprep.subr.mxu0 0.0
          %408 = vmatpush1.msra.mxu0 %v381
          %409 = vmatprep.subr.mxu0 0.0
          %410 = vmatpush1.msra.mxu0 %v382
          %411 = vmatprep.subr.mxu0 0.0
          %412 = vmatpush1.msra.mxu0 %v383
          %413 = vmatprep.subr.mxu0 0.0
          %414 = vmatpush1.msra.mxu0 %v384
          %415 = vmatprep.subr.mxu0 0.0
          %416 = vmatpush1.msra.mxu0 %v385
          %417 = vmatprep.subr.mxu0 0.0
          %418 = vmatpush1.msra.mxu0 %v386
          %419 = vmatprep.subr.mxu0 0.0
          %420 = vmatpush1.msra.mxu0 %v387
          %421 = vmatprep.subr.mxu0 0.0
          %422 = vmatpush1.msra.mxu0 %v388
          %423 = vmatprep.subr.mxu0 0.0
          %424 = vmatpush1.msra.mxu0 %v389
          %425 = vmatprep.subr.mxu0 0.0
          %426 = vmatpush1.msra.mxu0 %v390
          %427 = vmatprep.subr.mxu0 0.0
          %428 = vmatpush1.msra.mxu0 %v391
          %429 = vmatprep.subr.mxu0 0.0
          %430 = vmatpush1.msra.mxu0 %v392
          %431 = vmatprep.subr.mxu0 0.0
          %432 = vmatpush1.msra.mxu0 %v393
          %433 = vmatprep.subr.mxu0 0.0
          %434 = vmatpush1.msra.mxu0 0.0
          %435 = vmatprep.subr.mxu0 0.0
          %436 = vmatpush1.msra.mxu0 0.0
          %437 = vmatprep.subr.mxu0 0.0
          %438 = vmatpush1.msra.mxu0 0.0
          %439 = vmatprep.subr.mxu0 0.0
          %440 = vmatpush1.msra.mxu0 0.0
          %441 = vmatprep.subr.mxu0 0.0
          %442 = vmatpush1.msra.mxu0 0.0
          %443 = vmatprep.subr.mxu0 0.0
          %444 = vmatpush1.msra.mxu0 0.0
          %445 = vmatprep.subr.mxu0 0.0
          %446 = vmatpush1.msra.mxu0 0.0
          %447 = vmatprep.subr.mxu0 0.0
          %448 = vmatpush1.msra.mxu0 0.0
          %449 = vmatprep.subr.mxu0 0.0
          %450 = vmatpush1.msra.mxu0 0.0
          %451 = vmatprep.subr.mxu0 0.0
          %452 = vmatpush1.msra.mxu0 0.0
          %453 = vmatprep.subr.mxu0 0.0
          %454 = vmatpush1.msra.mxu0 0.0
          %455 = vmatprep.subr.mxu0 0.0
          %456 = vmatpush1.msra.mxu0 0.0
          %457 = vmatprep.subr.mxu0 0.0
          %458 = vmatpush1.msra.mxu0 0.0
          %459 = vmatprep.subr.mxu0 0.0
          %460 = vmatpush1.msra.mxu0 0.0
          %461 = vmatprep.subr.mxu0 0.0
          %462 = vmatpush1.msra.mxu0 0.0
          %463 = vmatprep.subr.mxu0 0.0
          %464 = vmatpush1.msra.mxu0 0.0
          %465 = vmatprep.mubr.f32.mxu0 0.0
          %466 = vmatmul.mubr.f32.gmra.mrb[0].mxu0 %v362
          %v467 = vpop.f32.mrb[0].mxu0
          %v468 = vadd.f32 %v399, %v467
          %v469 = vpop.f32.mrb[0].mxu0
          %470 = vmatprep.mubr.f32.mxu0 0.0
          %471 = vmatmul.mubr.f32.gmra.mrb[0].mxu0 %v363
          %v472 = vpop.f32.mrb[0].mxu0
          %v473 = vadd.f32 %v399, %v472
          %v474 = vpop.f32.mrb[0].mxu0
          %475 = vmatprep.mubr.f32.mxu0 0.0
          %476 = vmatmul.mubr.f32.gmra.mrb[0].mxu0 %v364
          %v477 = vpop.f32.mrb[0].mxu0
          %v478 = vadd.f32 %v399, %v477
          %v479 = vpop.f32.mrb[0].mxu0
          %480 = vmatprep.mubr.f32.mxu0 0.0
          %481 = vmatmul.mubr.f32.gmra.mrb[0].mxu0 %v365
          %v482 = vpop.f32.mrb[0].mxu0
          %v483 = vadd.f32 %v399, %v482
          %v484 = vpop.f32.mrb[0].mxu0
          %485 = vmatprep.mubr.f32.mxu0 0.0
          %486 = vmatmul.mubr.f32.gmra.mrb[0].mxu0 %v366
          %v487 = vpop.f32.mrb[0].mxu0
          %v488 = vadd.f32 %v399, %v487
          %v489 = vpop.f32.mrb[0].mxu0
          %490 = vmatprep.mubr.f32.mxu0 0.0
          %491 = vmatmul.mubr.f32.gmra.mrb[0].mxu0 %v367
          %v492 = vpop.f32.mrb[0].mxu0
          %v493 = vadd.f32 %v399, %v492
          %v494 = vpop.f32.mrb[0].mxu0
          %495 = vmatprep.mubr.f32.mxu0 0.0
          %496 = vmatmul.mubr.f32.gmra.mrb[0].mxu0 %v368
          %v497 = vpop.f32.mrb[0].mxu0
          %v498 = vadd.f32 %v399, %v497
          %v499 = vpop.f32.mrb[0].mxu0
          %500 = vmatprep.mubr.f32.mxu0 0.0
          %501 = vmatmul.mubr.f32.gmra.mrb[0].mxu0 %v369
          %v502 = vpop.f32.mrb[0].mxu0
          %v503 = vadd.f32 %v399, %v502
          %v504 = vpop.f32.mrb[0].mxu0
          %505 = vmatprep.mubr.f32.mxu0 0.0
          %506 = vmatmul.mubr.f32.gmra.mrb[0].mxu0 %v370
          %v507 = vpop.f32.mrb[0].mxu0
          %v508 = vadd.f32 %v399, %v507
          %v509 = vpop.f32.mrb[0].mxu0
          %510 = vmatprep.mubr.f32.mxu0 0.0
          %511 = vmatmul.mubr.f32.gmra.mrb[0].mxu0 %v371
          %v512 = vpop.f32.mrb[0].mxu0
          %v513 = vadd.f32 %v399, %v512
          %v514 = vpop.f32.mrb[0].mxu0
          %515 = vmatprep.mubr.f32.mxu0 0.0
          %516 = vmatmul.mubr.f32.gmra.mrb[0].mxu0 %v372
          %v517 = vpop.f32.mrb[0].mxu0
          %v518 = vadd.f32 %v399, %v517
          %v519 = vpop.f32.mrb[0].mxu0
          %520 = vmatprep.mubr.f32.mxu0 0.0
          %521 = vmatmul.mubr.f32.gmra.mrb[0].mxu0 %v373
          %v522 = vpop.f32.mrb[0].mxu0
          %v523 = vadd.f32 %v399, %v522
          %v524 = vpop.f32.mrb[0].mxu0
          %525 = vmatprep.mubr.f32.mxu0 0.0
          %526 = vmatmul.mubr.f32.gmra.mrb[0].mxu0 %v374
          %v527 = vpop.f32.mrb[0].mxu0
          %v528 = vadd.f32 %v399, %v527
          %v529 = vpop.f32.mrb[0].mxu0
          %530 = vmatprep.mubr.f32.mxu0 0.0
          %531 = vmatmul.mubr.f32.gmra.mrb[0].mxu0 %v375
          %v532 = vpop.f32.mrb[0].mxu0
          %v533 = vadd.f32 %v399, %v532
          %v534 = vpop.f32.mrb[0].mxu0
          %535 = vmatprep.mubr.f32.mxu0 0.0
          %536 = vmatmul.mubr.f32.gmra.mrb[0].mxu0 %v376
          %v537 = vpop.f32.mrb[0].mxu0
          %v538 = vadd.f32 %v399, %v537
          %v539 = vpop.f32.mrb[0].mxu0
          %540 = vmatprep.mubr.f32.mxu0 0.0
          %541 = vmatmul.mubr.f32.gmra.mrb[0].mxu0 %v377
          %v542 = vpop.f32.mrb[0].mxu0
          %v543 = vadd.f32 %v399, %v542
          %v544 = vpop.f32.mrb[0].mxu0
          %545 = vdwg.mxu0
          %v546 = vmax.f32 %v468, 0.0
          %v547 = vmax.f32 %v473, 0.0
          %v548 = vmax.f32 %v478, 0.0
          %v549 = vmax.f32 %v483, 0.0
          %v550 = vmax.f32 %v488, 0.0
          %v551 = vmax.f32 %v493, 0.0
          %v552 = vmax.f32 %v498, 0.0
          %v553 = vmax.f32 %v503, 0.0
          %v554 = vmax.f32 %v508, 0.0
          %v555 = vmax.f32 %v513, 0.0
          %v556 = vmax.f32 %v518, 0.0
          %v557 = vmax.f32 %v523, 0.0
          %v558 = vmax.f32 %v528, 0.0
          %v559 = vmax.f32 %v533, 0.0
          %v560 = vmax.f32 %v538, 0.0
          %v561 = vmax.f32 %v543, 0.0
          %v562 = vld [vmem:[#allocation10] sm:$0xff]
          %v563 = vld [vmem:[#allocation10 + $0x8] sm:$0xff]
          %v564 = vld [vmem:[#allocation10 + $0x10] sm:$0xff]
          %v565 = vld [vmem:[#allocation10 + $0x18] sm:$0xff]
          %v566 = vld [vmem:[#allocation10 + $0x20] sm:$0xff]
          %v567 = vld [vmem:[#allocation10 + $0x28] sm:$0xff]
          %v568 = vld [vmem:[#allocation10 + $0x30] sm:$0xff]
          %v569 = vld [vmem:[#allocation10 + $0x38] sm:$0xff]
          %v570 = vld [vmem:[#allocation10 + $0x40] sm:$0xff]
          %v571 = vld [vmem:[#allocation10 + $0x48] sm:$0xff]
          %v572 = vld [vmem:[#allocation10 + $0x50] sm:$0xff]
          %v573 = vld [vmem:[#allocation10 + $0x58] sm:$0xff]
          %v574 = vld [vmem:[#allocation10 + $0x60] sm:$0xff]
          %v575 = vld [vmem:[#allocation10 + $0x68] sm:$0xff]
          %v576 = vld [vmem:[#allocation10 + $0x70] sm:$0xff]
          %v577 = vld [vmem:[#allocation10 + $0x78] sm:$0xff]
          %v578 = vld [vmem:[#allocation12] sm:$0x1]
          %v580 = vlaneseq
          %v581 = vshrl.u32 %v580, 7
          %v582 = vsub.s32 0, %v581
          %v583 = vrot.slane %v578, %v582
          %585 = vmatprep.subr.mxu0 0.0
          %586 = vmatpush1.msra.mxu0 %v562
          %587 = vmatprep.subr.mxu0 0.0
          %588 = vmatpush1.msra.mxu0 %v563
          %589 = vmatprep.subr.mxu0 0.0
          %590 = vmatpush1.msra.mxu0 %v564
          %591 = vmatprep.subr.mxu0 0.0
          %592 = vmatpush1.msra.mxu0 %v565
          %593 = vmatprep.subr.mxu0 0.0
          %594 = vmatpush1.msra.mxu0 %v566
          %595 = vmatprep.subr.mxu0 0.0
          %596 = vmatpush1.msra.mxu0 %v567
          %597 = vmatprep.subr.mxu0 0.0
          %598 = vmatpush1.msra.mxu0 %v568
          %599 = vmatprep.subr.mxu0 0.0
          %600 = vmatpush1.msra.mxu0 %v569
          %601 = vmatprep.subr.mxu0 0.0
          %602 = vmatpush1.msra.mxu0 %v570
          %603 = vmatprep.subr.mxu0 0.0
          %604 = vmatpush1.msra.mxu0 %v571
          %605 = vmatprep.subr.mxu0 0.0
          %606 = vmatpush1.msra.mxu0 %v572
          %607 = vmatprep.subr.mxu0 0.0
          %608 = vmatpush1.msra.mxu0 %v573
          %609 = vmatprep.subr.mxu0 0.0
          %610 = vmatpush1.msra.mxu0 %v574
          %611 = vmatprep.subr.mxu0 0.0
          %612 = vmatpush1.msra.mxu0 %v575
          %613 = vmatprep.subr.mxu0 0.0
          %614 = vmatpush1.msra.mxu0 %v576
          %615 = vmatprep.subr.mxu0 0.0
          %616 = vmatpush1.msra.mxu0 %v577
          %617 = vmatprep.subr.mxu0 0.0
          %618 = vmatpush1.msra.mxu0 0.0
          %619 = vmatprep.subr.mxu0 0.0
          %620 = vmatpush1.msra.mxu0 0.0
          %621 = vmatprep.subr.mxu0 0.0
          %622 = vmatpush1.msra.mxu0 0.0
          %623 = vmatprep.subr.mxu0 0.0
          %624 = vmatpush1.msra.mxu0 0.0
          %625 = vmatprep.subr.mxu0 0.0
          %626 = vmatpush1.msra.mxu0 0.0
          %627 = vmatprep.subr.mxu0 0.0
          %628 = vmatpush1.msra.mxu0 0.0
          %629 = vmatprep.subr.mxu0 0.0
          %630 = vmatpush1.msra.mxu0 0.0
          %631 = vmatprep.subr.mxu0 0.0
          %632 = vmatpush1.msra.mxu0 0.0
          %633 = vmatprep.subr.mxu0 0.0
          %634 = vmatpush1.msra.mxu0 0.0
          %635 = vmatprep.subr.mxu0 0.0
          %636 = vmatpush1.msra.mxu0 0.0
          %637 = vmatprep.subr.mxu0 0.0
          %638 = vmatpush1.msra.mxu0 0.0
          %639 = vmatprep.subr.mxu0 0.0
          %640 = vmatpush1.msra.mxu0 0.0
          %641 = vmatprep.subr.mxu0 0.0
          %642 = vmatpush1.msra.mxu0 0.0
          %643 = vmatprep.subr.mxu0 0.0
          %644 = vmatpush1.msra.mxu0 0.0
          %645 = vmatprep.subr.mxu0 0.0
          %646 = vmatpush1.msra.mxu0 0.0
          %647 = vmatprep.subr.mxu0 0.0
          %648 = vmatpush1.msra.mxu0 0.0
          %649 = vmatprep.mubr.f32.mxu0 0.0
          %650 = vmatmul.mubr.f32.gmra.mrb[0].mxu0 %v546
          %v651 = vpop.f32.mrb[0].mxu0
          %v652 = vadd.f32 %v583, %v651
          %v653 = vpop.f32.mrb[0].mxu0
          %654 = vmatprep.mubr.f32.mxu0 0.0
          %655 = vmatmul.mubr.f32.gmra.mrb[0].mxu0 %v547
          %v656 = vpop.f32.mrb[0].mxu0
          %v657 = vadd.f32 %v583, %v656
          %v658 = vpop.f32.mrb[0].mxu0
          %659 = vmatprep.mubr.f32.mxu0 0.0
          %660 = vmatmul.mubr.f32.gmra.mrb[0].mxu0 %v548
          %v661 = vpop.f32.mrb[0].mxu0
          %v662 = vadd.f32 %v583, %v661
          %v663 = vpop.f32.mrb[0].mxu0
          %664 = vmatprep.mubr.f32.mxu0 0.0
          %665 = vmatmul.mubr.f32.gmra.mrb[0].mxu0 %v549
          %v666 = vpop.f32.mrb[0].mxu0
          %v667 = vadd.f32 %v583, %v666
          %v668 = vpop.f32.mrb[0].mxu0
          %669 = vmatprep.mubr.f32.mxu0 0.0
          %670 = vmatmul.mubr.f32.gmra.mrb[0].mxu0 %v550
          %v671 = vpop.f32.mrb[0].mxu0
          %v672 = vadd.f32 %v583, %v671
          %v673 = vpop.f32.mrb[0].mxu0
          %674 = vmatprep.mubr.f32.mxu0 0.0
          %675 = vmatmul.mubr.f32.gmra.mrb[0].mxu0 %v551
          %v676 = vpop.f32.mrb[0].mxu0
          %v677 = vadd.f32 %v583, %v676
          %v678 = vpop.f32.mrb[0].mxu0
          %679 = vmatprep.mubr.f32.mxu0 0.0
          %680 = vmatmul.mubr.f32.gmra.mrb[0].mxu0 %v552
          %v681 = vpop.f32.mrb[0].mxu0
          %v682 = vadd.f32 %v583, %v681
          %v683 = vpop.f32.mrb[0].mxu0
          %684 = vmatprep.mubr.f32.mxu0 0.0
          %685 = vmatmul.mubr.f32.gmra.mrb[0].mxu0 %v553
          %v686 = vpop.f32.mrb[0].mxu0
          %v687 = vadd.f32 %v583, %v686
          %v688 = vpop.f32.mrb[0].mxu0
          %689 = vmatprep.mubr.f32.mxu0 0.0
          %690 = vmatmul.mubr.f32.gmra.mrb[0].mxu0 %v554
          %v691 = vpop.f32.mrb[0].mxu0
          %v692 = vadd.f32 %v583, %v691
          %v693 = vpop.f32.mrb[0].mxu0
          %694 = vmatprep.mubr.f32.mxu0 0.0
          %695 = vmatmul.mubr.f32.gmra.mrb[0].mxu0 %v555
          %v696 = vpop.f32.mrb[0].mxu0
          %v697 = vadd.f32 %v583, %v696
          %v698 = vpop.f32.mrb[0].mxu0
          %699 = vmatprep.mubr.f32.mxu0 0.0
          %700 = vmatmul.mubr.f32.gmra.mrb[0].mxu0 %v556
          %v701 = vpop.f32.mrb[0].mxu0
          %v702 = vadd.f32 %v583, %v701
          %v703 = vpop.f32.mrb[0].mxu0
          %704 = vmatprep.mubr.f32.mxu0 0.0
          %705 = vmatmul.mubr.f32.gmra.mrb[0].mxu0 %v557
          %v706 = vpop.f32.mrb[0].mxu0
          %v707 = vadd.f32 %v583, %v706
          %v708 = vpop.f32.mrb[0].mxu0
          %709 = vmatprep.mubr.f32.mxu0 0.0
          %710 = vmatmul.mubr.f32.gmra.mrb[0].mxu0 %v558
          %v711 = vpop.f32.mrb[0].mxu0
          %v712 = vadd.f32 %v583, %v711
          %v713 = vpop.f32.mrb[0].mxu0
          %714 = vmatprep.mubr.f32.mxu0 0.0
          %715 = vmatmul.mubr.f32.gmra.mrb[0].mxu0 %v559
          %v716 = vpop.f32.mrb[0].mxu0
          %v717 = vadd.f32 %v583, %v716
          %v718 = vpop.f32.mrb[0].mxu0
          %719 = vmatprep.mubr.f32.mxu0 0.0
          %720 = vmatmul.mubr.f32.gmra.mrb[0].mxu0 %v560
          %v721 = vpop.f32.mrb[0].mxu0
          %v722 = vadd.f32 %v583, %v721
          %v723 = vpop.f32.mrb[0].mxu0
          %724 = vmatprep.mubr.f32.mxu0 0.0
          %725 = vmatmul.mubr.f32.gmra.mrb[0].mxu0 %v561
          %v726 = vpop.f32.mrb[0].mxu0
          %v727 = vadd.f32 %v583, %v726
          %v728 = vpop.f32.mrb[0].mxu0
          %729 = vdwg.mxu0
          %v730 = vpack.c.bf16 %v657, %v652
          %v731 = vpack.c.bf16 %v667, %v662
          %v732 = vpack.c.bf16 %v677, %v672
          %v733 = vpack.c.bf16 %v687, %v682
          %v734 = vpack.c.bf16 %v697, %v692
          %v735 = vpack.c.bf16 %v707, %v702
          %v736 = vpack.c.bf16 %v717, %v712
          %v737 = vpack.c.bf16 %v727, %v722
          %s738 = sshra.s32 %s357, 4
          %s739 = sand.u32 %s357, 15
          %s740 = smul.addr %s738, 8
          %s741 = scalar_lea.vmem [#allocation2], %s740
          %742 = vst [vmem:[%s741] sm:$0xff] %v730
          %743 = vst [vmem:[%s741 + $0x8] sm:$0xff] %v731
          %744 = vst [vmem:[%s741 + $0x10] sm:$0xff] %v732
          %745 = vst [vmem:[%s741 + $0x18] sm:$0xff] %v733
          %746 = vst [vmem:[%s741 + $0x20] sm:$0xff] %v734
          %747 = vst [vmem:[%s741 + $0x28] sm:$0xff] %v735
          %748 = vst [vmem:[%s741 + $0x30] sm:$0xff] %v736
          %749 = vst [vmem:[%s741 + $0x38] sm:$0xff] %v737
          %v750 = vmul.f32 %v652, 0.1
          %v751 = vmul.f32 %v657, 0.1
          %v752 = vmul.f32 %v662, 0.1
          %v753 = vmul.f32 %v667, 0.1
          %v754 = vmul.f32 %v672, 0.1
          %v755 = vmul.f32 %v677, 0.1
          %v756 = vmul.f32 %v682, 0.1
          %v757 = vmul.f32 %v687, 0.1
          %v758 = vmul.f32 %v692, 0.1
          %v759 = vmul.f32 %v697, 0.1
          %v760 = vmul.f32 %v702, 0.1
          %v761 = vmul.f32 %v707, 0.1
          %v762 = vmul.f32 %v712, 0.1
          %v763 = vmul.f32 %v717, 0.1
          %v764 = vmul.f32 %v722, 0.1
          %v765 = vmul.f32 %v727, 0.1
          %s766 = scalar_lea.vmem [#allocation3], %s357
          %767 = vst [vmem:[%s766] sm:$0xff] %v750
          %768 = vst [vmem:[%s766 + $0x8] sm:$0xff] %v751
          %769 = vst [vmem:[%s766 + $0x10] sm:$0xff] %v752
          %770 = vst [vmem:[%s766 + $0x18] sm:$0xff] %v753
          %771 = vst [vmem:[%s766 + $0x20] sm:$0xff] %v754
          %772 = vst [vmem:[%s766 + $0x28] sm:$0xff] %v755
          %773 = vst [vmem:[%s766 + $0x30] sm:$0xff] %v756
          %774 = vst [vmem:[%s766 + $0x38] sm:$0xff] %v757
          %775 = vst [vmem:[%s766 + $0x40] sm:$0xff] %v758
          %776 = vst [vmem:[%s766 + $0x48] sm:$0xff] %v759
          %777 = vst [vmem:[%s766 + $0x50] sm:$0xff] %v760
          %778 = vst [vmem:[%s766 + $0x58] sm:$0xff] %v761
          %779 = vst [vmem:[%s766 + $0x60] sm:$0xff] %v762
          %780 = vst [vmem:[%s766 + $0x68] sm:$0xff] %v763
          %781 = vst [vmem:[%s766 + $0x70] sm:$0xff] %v764
          %782 = vst [vmem:[%s766 + $0x78] sm:$0xff] %v765
        $region72: #{tpu_custom_call.1} parent=43 // pred_fallthru
          _
        %p783 = scmp.gt.s32.totalorder %s28, 0
        // Predicated region
        $region73: #{tpu_custom_call.1} parent=43 // pred_check
          %p784 = pneg %p783
        $region74: #{tpu_custom_call.1} parent=43 // pred_check_branch
          %786 = sbr.rel (%p784) target = $region76
        $region75: #{tpu_custom_call.1} parent=43 // pred_region
          %s787 = sadd.s32 %s28, 1
          %p788 = scmp.lt.s32.totalorder %s787, 0
          %s789 = ssub.s32 0, %s787
          %s790 = scalar_select %p788, %s789, %s787
          %s791 = sand.u32 %s790, 1
          %s792 = ssub.s32 0, %s791
          %s793 = scalar_select %p788, %s792, %s791
          %p794 = scmp.ne.s32.totalorder %s793, 0
          %p795 = scmp.lt.s32.totalorder %s793, 0
          %p796 = pnand %p795, %p794
          %p797 = pneg %p796
          %s798 = sadd.s32 %s793, 2
          %s799 = scalar_select %p797, %s798, %s793
          %s800 = smul.u32 %s799, 16
          %s801 = smul.addr %s800, 8
          %s802 = scalar_lea.vmem [#allocation2], %s801
          %v803 = vld [vmem:[%s802] sm:$0xff]
          %v804 = vld [vmem:[%s802 + $0x8] sm:$0xff]
          %v805 = vld [vmem:[%s802 + $0x10] sm:$0xff]
          %v806 = vld [vmem:[%s802 + $0x18] sm:$0xff]
          %v807 = vld [vmem:[%s802 + $0x20] sm:$0xff]
          %v808 = vld [vmem:[%s802 + $0x28] sm:$0xff]
          %v809 = vld [vmem:[%s802 + $0x30] sm:$0xff]
          %v810 = vld [vmem:[%s802 + $0x38] sm:$0xff]
          %v811 = vld [vmem:[%s802 + $0x40] sm:$0xff]
          %v812 = vld [vmem:[%s802 + $0x48] sm:$0xff]
          %v813 = vld [vmem:[%s802 + $0x50] sm:$0xff]
          %v814 = vld [vmem:[%s802 + $0x58] sm:$0xff]
          %v815 = vld [vmem:[%s802 + $0x60] sm:$0xff]
          %v816 = vld [vmem:[%s802 + $0x68] sm:$0xff]
          %v817 = vld [vmem:[%s802 + $0x70] sm:$0xff]
          %v818 = vld [vmem:[%s802 + $0x78] sm:$0xff]
          %s819 = sshra.s32 %s357, 3
          %s820 = sand.u32 %s357, 7
          %s821 = smul.u32 %s819, 2
          %s822 = smul.addr %s821, 4
          %s823 = scalar_lea.vmem [#allocation13], %s822
          %v824 = vld [vmem:[%s823] sm:$0xff]
          %v825 = vld [vmem:[%s823 + $0x8] sm:$0xff]
          %v826 = vld [vmem:[%s823 + $0x10] sm:$0xff]
          %v827 = vld [vmem:[%s823 + $0x18] sm:$0xff]
          %v828 = vld [vmem:[%s823 + $0x20] sm:$0xff]
          %v829 = vld [vmem:[%s823 + $0x28] sm:$0xff]
          %v830 = vld [vmem:[%s823 + $0x30] sm:$0xff]
          %v831 = vld [vmem:[%s823 + $0x38] sm:$0xff]
          %v832 = vld [vmem:[%s823 + $0x40] sm:$0xff]
          %v833 = vld [vmem:[%s823 + $0x48] sm:$0xff]
          %v834 = vld [vmem:[%s823 + $0x50] sm:$0xff]
          %v835 = vld [vmem:[%s823 + $0x58] sm:$0xff]
          %v836 = vld [vmem:[%s823 + $0x60] sm:$0xff]
          %v837 = vld [vmem:[%s823 + $0x68] sm:$0xff]
          %v838 = vld [vmem:[%s823 + $0x70] sm:$0xff]
          %v839 = vld [vmem:[%s823 + $0x78] sm:$0xff]
          %s840 = scalar_lea.vmem [#allocation3], %s357
          %v841 = vld [vmem:[%s840] sm:$0xff]
          %v842 = vld [vmem:[%s840 + $0x8] sm:$0xff]
          %v843 = vld [vmem:[%s840 + $0x10] sm:$0xff]
          %v844 = vld [vmem:[%s840 + $0x18] sm:$0xff]
          %v845 = vld [vmem:[%s840 + $0x20] sm:$0xff]
          %v846 = vld [vmem:[%s840 + $0x28] sm:$0xff]
          %v847 = vld [vmem:[%s840 + $0x30] sm:$0xff]
          %v848 = vld [vmem:[%s840 + $0x38] sm:$0xff]
          %v849 = vld [vmem:[%s840 + $0x40] sm:$0xff]
          %v850 = vld [vmem:[%s840 + $0x48] sm:$0xff]
          %v851 = vld [vmem:[%s840 + $0x50] sm:$0xff]
          %v852 = vld [vmem:[%s840 + $0x58] sm:$0xff]
          %v853 = vld [vmem:[%s840 + $0x60] sm:$0xff]
          %v854 = vld [vmem:[%s840 + $0x68] sm:$0xff]
          %v855 = vld [vmem:[%s840 + $0x70] sm:$0xff]
          %v856 = vld [vmem:[%s840 + $0x78] sm:$0xff]
          %v873 = vunpack.c.l.b16 %v824
          %v874 = vunpack.c.h.b16 %v824
          %v875 = vunpack.c.l.b16 %v825
          %v876 = vunpack.c.h.b16 %v825
          %v877 = vunpack.c.l.b16 %v826
          %v878 = vunpack.c.h.b16 %v826
          %v879 = vunpack.c.l.b16 %v827
          %v880 = vunpack.c.h.b16 %v827
          %v881 = vunpack.c.l.b16 %v828
          %v882 = vunpack.c.h.b16 %v828
          %v883 = vunpack.c.l.b16 %v829
          %v884 = vunpack.c.h.b16 %v829
          %v885 = vunpack.c.l.b16 %v830
          %v886 = vunpack.c.h.b16 %v830
          %v887 = vunpack.c.l.b16 %v831
          %v888 = vunpack.c.h.b16 %v831
          %v889 = vunpack.c.l.b16 %v832
          %v890 = vunpack.c.h.b16 %v832
          %v891 = vunpack.c.l.b16 %v833
          %v892 = vunpack.c.h.b16 %v833
          %v893 = vunpack.c.l.b16 %v834
          %v894 = vunpack.c.h.b16 %v834
          %v895 = vunpack.c.l.b16 %v835
          %v896 = vunpack.c.h.b16 %v835
          %v897 = vunpack.c.l.b16 %v836
          %v898 = vunpack.c.h.b16 %v836
          %v899 = vunpack.c.l.b16 %v837
          %v900 = vunpack.c.h.b16 %v837
          %v901 = vunpack.c.l.b16 %v838
          %v902 = vunpack.c.h.b16 %v838
          %v903 = vunpack.c.l.b16 %v839
          %v904 = vunpack.c.h.b16 %v839
          %v905 = vpack.c.b16 %v875, %v873
          %v906 = vpack.c.b16 %v876, %v874
          %v907 = vpack.c.b16 %v879, %v877
          %v908 = vpack.c.b16 %v880, %v878
          %v909 = vpack.c.b16 %v883, %v881
          %v910 = vpack.c.b16 %v884, %v882
          %v911 = vpack.c.b16 %v887, %v885
          %v912 = vpack.c.b16 %v888, %v886
          %v913 = vpack.c.b16 %v891, %v889
          %v914 = vpack.c.b16 %v892, %v890
          %v915 = vpack.c.b16 %v895, %v893
          %v916 = vpack.c.b16 %v896, %v894
          %v917 = vpack.c.b16 %v899, %v897
          %v918 = vpack.c.b16 %v900, %v898
          %v919 = vpack.c.b16 %v903, %v901
          %v920 = vpack.c.b16 %v904, %v902
          %937 = vmatprep.subr.bf16.mxu0 0
          %938 = vmatpush1.bf16.msra.mxu0 %v803
          %939 = vmatprep.subr.bf16.mxu0 0
          %940 = vmatpush1.bf16.msra.mxu0 %v804
          %941 = vmatprep.subr.bf16.mxu0 0
          %942 = vmatpush1.bf16.msra.mxu0 %v805
          %943 = vmatprep.subr.bf16.mxu0 0
          %944 = vmatpush1.bf16.msra.mxu0 %v806
          %945 = vmatprep.subr.bf16.mxu0 0
          %946 = vmatpush1.bf16.msra.mxu0 %v807
          %947 = vmatprep.subr.bf16.mxu0 0
          %948 = vmatpush1.bf16.msra.mxu0 %v808
          %949 = vmatprep.subr.bf16.mxu0 0
          %950 = vmatpush1.bf16.msra.mxu0 %v809
          %951 = vmatprep.subr.bf16.mxu0 0
          %952 = vmatpush1.bf16.msra.mxu0 %v810
          %953 = vmatprep.subr.bf16.mxu0 0
          %954 = vmatpush1.bf16.msra.mxu0 %v811
          %955 = vmatprep.subr.bf16.mxu0 0
          %956 = vmatpush1.bf16.msra.mxu0 %v812
          %957 = vmatprep.subr.bf16.mxu0 0
          %958 = vmatpush1.bf16.msra.mxu0 %v813
          %959 = vmatprep.subr.bf16.mxu0 0
          %960 = vmatpush1.bf16.msra.mxu0 %v814
          %961 = vmatprep.subr.bf16.mxu0 0
          %962 = vmatpush1.bf16.msra.mxu0 %v815
          %963 = vmatprep.subr.bf16.mxu0 0
          %964 = vmatpush1.bf16.msra.mxu0 %v816
          %965 = vmatprep.subr.bf16.mxu0 0
          %966 = vmatpush1.bf16.msra.mxu0 %v817
          %967 = vmatprep.subr.bf16.mxu0 0
          %968 = vmatpush1.bf16.msra.mxu0 %v818
          %969 = vmatprep.mubr.bf16.mxu0 %v906
          %970 = vmatmul.mubr.bf16.gmra.mrb[0].mxu0 %v905
          %v971 = vpop.f32.mrb[0].mxu0
          %v972 = vadd.f32 %v841, %v971
          %v973 = vpop.f32.mrb[0].mxu0
          %v974 = vpop.f32.mrb[0].mxu0
          %v975 = vadd.f32 %v842, %v974
          %v976 = vpop.f32.mrb[0].mxu0
          %977 = vmatprep.mubr.bf16.mxu0 %v908
          %978 = vmatmul.mubr.bf16.gmra.mrb[0].mxu0 %v907
          %v979 = vpop.f32.mrb[0].mxu0
          %v980 = vadd.f32 %v843, %v979
          %v981 = vpop.f32.mrb[0].mxu0
          %v982 = vpop.f32.mrb[0].mxu0
          %v983 = vadd.f32 %v844, %v982
          %v984 = vpop.f32.mrb[0].mxu0
          %985 = vmatprep.mubr.bf16.mxu0 %v910
          %986 = vmatmul.mubr.bf16.gmra.mrb[0].mxu0 %v909
          %v987 = vpop.f32.mrb[0].mxu0
          %v988 = vadd.f32 %v845, %v987
          %v989 = vpop.f32.mrb[0].mxu0
          %v990 = vpop.f32.mrb[0].mxu0
          %v991 = vadd.f32 %v846, %v990
          %v992 = vpop.f32.mrb[0].mxu0
          %993 = vmatprep.mubr.bf16.mxu0 %v912
          %994 = vmatmul.mubr.bf16.gmra.mrb[0].mxu0 %v911
          %v995 = vpop.f32.mrb[0].mxu0
          %v996 = vadd.f32 %v847, %v995
          %v997 = vpop.f32.mrb[0].mxu0
          %v998 = vpop.f32.mrb[0].mxu0
          %v999 = vadd.f32 %v848, %v998
          %v1000 = vpop.f32.mrb[0].mxu0
          %1001 = vmatprep.mubr.bf16.mxu0 %v914
          %1002 = vmatmul.mubr.bf16.gmra.mrb[0].mxu0 %v913
          %v1003 = vpop.f32.mrb[0].mxu0
          %v1004 = vadd.f32 %v849, %v1003
          %v1005 = vpop.f32.mrb[0].mxu0
          %v1006 = vpop.f32.mrb[0].mxu0
          %v1007 = vadd.f32 %v850, %v1006
          %v1008 = vpop.f32.mrb[0].mxu0
          %1009 = vmatprep.mubr.bf16.mxu0 %v916
          %1010 = vmatmul.mubr.bf16.gmra.mrb[0].mxu0 %v915
          %v1011 = vpop.f32.mrb[0].mxu0
          %v1012 = vadd.f32 %v851, %v1011
          %v1013 = vpop.f32.mrb[0].mxu0
          %v1014 = vpop.f32.mrb[0].mxu0
          %v1015 = vadd.f32 %v852, %v1014
          %v1016 = vpop.f32.mrb[0].mxu0
          %1017 = vmatprep.mubr.bf16.mxu0 %v918
          %1018 = vmatmul.mubr.bf16.gmra.mrb[0].mxu0 %v917
          %v1019 = vpop.f32.mrb[0].mxu0
          %v1020 = vadd.f32 %v853, %v1019
          %v1021 = vpop.f32.mrb[0].mxu0
          %v1022 = vpop.f32.mrb[0].mxu0
          %v1023 = vadd.f32 %v854, %v1022
          %v1024 = vpop.f32.mrb[0].mxu0
          %1025 = vmatprep.mubr.bf16.mxu0 %v920
          %1026 = vmatmul.mubr.bf16.gmra.mrb[0].mxu0 %v919
          %v1027 = vpop.f32.mrb[0].mxu0
          %v1028 = vadd.f32 %v855, %v1027
          %v1029 = vpop.f32.mrb[0].mxu0
          %v1030 = vpop.f32.mrb[0].mxu0
          %v1031 = vadd.f32 %v856, %v1030
          %v1032 = vpop.f32.mrb[0].mxu0
          %1033 = vdwg.mxu0
          %p1034 = scmp.lt.s32.totalorder %s28, 0
          %s1035 = ssub.s32 0, %s28
          %s1036 = scalar_select %p1034, %s1035, %s28
          %s1037 = sand.u32 %s1036, 1
          %s1038 = ssub.s32 0, %s1037
          %s1039 = scalar_select %p1034, %s1038, %s1037
          %p1040 = scmp.ne.s32.totalorder %s1039, 0
          %p1041 = scmp.lt.s32.totalorder %s1039, 0
          %p1042 = pnand %p1041, %p1040
          %p1043 = pneg %p1042
          %s1044 = sadd.s32 %s1039, 2
          %s1045 = scalar_select %p1043, %s1044, %s1039
          %p1046 = scmp.eq.s32.totalorder %s1045, 0
          // Predicated region
          $region77: #{tpu_custom_call.1} parent=75 // pred_check
            %p1047 = pneg %p1046
          $region78: #{tpu_custom_call.1} parent=75 // pred_check_branch
            %1049 = sbr.rel (%p1047) target = $region80
          $region79: #{tpu_custom_call.1} parent=75 // pred_region
            %v1050 = vpack.c.bf16 %v975, %v972
            %v1051 = vpack.c.bf16 %v983, %v980
            %v1052 = vpack.c.bf16 %v991, %v988
            %v1053 = vpack.c.bf16 %v999, %v996
            %v1054 = vpack.c.bf16 %v1007, %v1004
            %v1055 = vpack.c.bf16 %v1015, %v1012
            %v1056 = vpack.c.bf16 %v1023, %v1020
            %v1057 = vpack.c.bf16 %v1031, %v1028
            %s1058 = sshra.s32 %s357, 4
            %s1059 = sand.u32 %s357, 15
            %s1060 = smul.addr %s1058, 8
            %s1061 = scalar_lea.vmem [#allocation2], %s1060
            %1062 = vst [vmem:[%s1061] sm:$0xff] %v1050
            %1063 = vst [vmem:[%s1061 + $0x8] sm:$0xff] %v1051
            %1064 = vst [vmem:[%s1061 + $0x10] sm:$0xff] %v1052
            %1065 = vst [vmem:[%s1061 + $0x18] sm:$0xff] %v1053
            %1066 = vst [vmem:[%s1061 + $0x20] sm:$0xff] %v1054
            %1067 = vst [vmem:[%s1061 + $0x28] sm:$0xff] %v1055
            %1068 = vst [vmem:[%s1061 + $0x30] sm:$0xff] %v1056
            %1069 = vst [vmem:[%s1061 + $0x38] sm:$0xff] %v1057
          $region80: #{tpu_custom_call.1} parent=75 // pred_fallthru
            _
          %p1070 = scmp.eq.s32.totalorder %s1045, 1
          // Predicated region
          $region81: #{tpu_custom_call.1} parent=75 // pred_check
            %p1071 = pneg %p1070
          $region82: #{tpu_custom_call.1} parent=75 // pred_check_branch
            %1073 = sbr.rel (%p1071) target = $region84
          $region83: #{tpu_custom_call.1} parent=75 // pred_region
            %v1074 = vpack.c.bf16 %v975, %v972
            %v1075 = vpack.c.bf16 %v983, %v980
            %v1076 = vpack.c.bf16 %v991, %v988
            %v1077 = vpack.c.bf16 %v999, %v996
            %v1078 = vpack.c.bf16 %v1007, %v1004
            %v1079 = vpack.c.bf16 %v1015, %v1012
            %v1080 = vpack.c.bf16 %v1023, %v1020
            %v1081 = vpack.c.bf16 %v1031, %v1028
            %s1082 = sshra.s32 %s357, 4
            %s1083 = sand.u32 %s357, 15
            %s1084 = sadd.s32 %s1082, 16
            %s1085 = smul.addr %s1084, 8
            %s1086 = scalar_lea.vmem [#allocation2], %s1085
            %1087 = vst [vmem:[%s1086] sm:$0xff] %v1074
            %1088 = vst [vmem:[%s1086 + $0x8] sm:$0xff] %v1075
            %1089 = vst [vmem:[%s1086 + $0x10] sm:$0xff] %v1076
            %1090 = vst [vmem:[%s1086 + $0x18] sm:$0xff] %v1077
            %1091 = vst [vmem:[%s1086 + $0x20] sm:$0xff] %v1078
            %1092 = vst [vmem:[%s1086 + $0x28] sm:$0xff] %v1079
            %1093 = vst [vmem:[%s1086 + $0x30] sm:$0xff] %v1080
            %1094 = vst [vmem:[%s1086 + $0x38] sm:$0xff] %v1081
          $region84: #{tpu_custom_call.1} parent=75 // pred_fallthru
            _
          %p1095 = scmp.eq.s32.totalorder %s28, 10
          // Predicated region
          $region85: #{tpu_custom_call.1} parent=75 // pred_check
            %p1096 = pneg %p1095
          $region86: #{tpu_custom_call.1} parent=75 // pred_check_branch
            %1098 = sbr.rel (%p1096) target = $region88
          $region87: #{tpu_custom_call.1} parent=75 // pred_region
            %s1099 = scalar_lea.vmem [#allocation15], %s357
            %1100 = vst [vmem:[%s1099] sm:$0xff] %v972
            %1101 = vst [vmem:[%s1099 + $0x8] sm:$0xff] %v975
            %1102 = vst [vmem:[%s1099 + $0x10] sm:$0xff] %v980
            %1103 = vst [vmem:[%s1099 + $0x18] sm:$0xff] %v983
            %1104 = vst [vmem:[%s1099 + $0x20] sm:$0xff] %v988
            %1105 = vst [vmem:[%s1099 + $0x28] sm:$0xff] %v991
            %1106 = vst [vmem:[%s1099 + $0x30] sm:$0xff] %v996
            %1107 = vst [vmem:[%s1099 + $0x38] sm:$0xff] %v999
            %1108 = vst [vmem:[%s1099 + $0x40] sm:$0xff] %v1004
            %1109 = vst [vmem:[%s1099 + $0x48] sm:$0xff] %v1007
            %1110 = vst [vmem:[%s1099 + $0x50] sm:$0xff] %v1012
            %1111 = vst [vmem:[%s1099 + $0x58] sm:$0xff] %v1015
            %1112 = vst [vmem:[%s1099 + $0x60] sm:$0xff] %v1020
            %1113 = vst [vmem:[%s1099 + $0x68] sm:$0xff] %v1023
            %1114 = vst [vmem:[%s1099 + $0x70] sm:$0xff] %v1028
            %1115 = vst [vmem:[%s1099 + $0x78] sm:$0xff] %v1031
          $region88: #{tpu_custom_call.1} parent=75 // pred_fallthru
            _
        $region76: #{tpu_custom_call.1} parent=43 // pred_fallthru
          _
        // Predicated region
        $region89: #{tpu_custom_call.1} parent=43 // pred_check
          %p1116 = pneg %p188
        $region90: #{tpu_custom_call.1} parent=43 // pred_check_branch
          %1118 = sbr.rel (%p1116) target = $region92
        $region91: #{tpu_custom_call.1} parent=43 // pred_region
          %s1120 = ssub.s32 4096, 4096
          %1121 = vsyncadd [#allocation6], %s1120
          %s1122 = sshll.u32 [#allocation15], 4
          %s1123 = int_to_ptr.vmem [resolvable:$true] %s1122
          %1128 = dma.vmem_to_hbm [thread:$0]  %s1123, 4096, %s6, [#allocation6], 128, 128, 8
        $region92: #{tpu_custom_call.1} parent=43 // pred_fallthru
          _
        // Predicated region
        $region93: #{tpu_custom_call.1} parent=43 // pred_check
          %p1129 = pneg %p188
        $region94: #{tpu_custom_call.1} parent=43 // pred_check_branch
          %1131 = sbr.rel (%p1129) target = $region96
        $region95: #{tpu_custom_call.1} parent=43 // pred_region
          %1132 = dma.done [#allocation6], 4096
        $region96: #{tpu_custom_call.1} parent=43 // pred_fallthru
          _
      $region44: #{tpu_custom_call.1} parent=5 // pred_fallthru
        _
      %p1133 = scmp.le.s32.totalorder 2, %s19
      // Predicated region
      $region97: #{tpu_custom_call.1} parent=5 // pred_check
        %p1134 = pneg %p1133
      $region98: #{tpu_custom_call.1} parent=5 // pred_check_branch
        %1136 = sbr.rel (%p1134) target = $region100
      $region99: #{tpu_custom_call.1} parent=5 // pred_region
        %s1137 = ssub.s32 %s19, 2
      $region100: #{tpu_custom_call.1} parent=5 // pred_fallthru
        _
    $region6: #{tpu_custom_call.1} parent=1 // loop_footer
      %s23 = sadd.s32 1, %s19
    $region7: #{tpu_custom_call.1} parent=1 // loop_footer_branch
      %18 = sbr.rel target = $region3
    $region8: #{tpu_custom_call.1} parent=1 // loop_exit
      _
    %1138 = vsyncpa [#allocation5], 1
    %s1139 = scalar_lea.sflag [#allocation5], 1
    %1140 = vsyncpa %s1139, 1
    %1141 = vsyncpa [#allocation8], 1
    %1142 = vsyncpa [#allocation11], 1
    %1143 = vsyncpa [#allocation14], 1
    %1144 = vsyncpa [#allocation6], 1
    %s1145 = scalar_lea.sflag [#allocation6], 1
    %1146 = vsyncpa %s1145, 1

</llo_original>
